<compile_context>
chip_gen: v7x
topology: tpu7x:2x2x1
jax: 0.10.0
libtpu: 0.0.40
codegen_flags: <defaults>
</compile_context>

<pallas_src>
import jax
import jax.numpy as jnp
import numpy as np
from jax import lax
from jax.experimental import pallas as pl
from jax.experimental.pallas import tpu as pltpu

C_IN = 512   # fixed by the module: nn.Conv2d(in_channels=512, ...)
K_TAPS = 9   # 3x3 kernel taps, flattened as ky*3 + kx


def _conv3x3_tail_kernel(xa_ref, xt_ref, xb_ref, w_ref, b_ref, o_ref):
    """3x3 / stride-1 / pad-1 conv, 512 -> 1 channels, one (n, h-tile) block per call.

    xa_ref : (1, tH, W, C)  body rows of the tile (NHWC, unpadded)
    xt_ref : (1, 1,  W, C)  row above the tile (index clamped at the top edge)
    xb_ref : (1, 1,  W, C)  row below the tile (index clamped at the bottom edge)
    w_ref  : (C, 9)         all 9 taps as MXU columns: w_ref[c, ky*3+kx]
    b_ref  : (1, 1)         bias
    o_ref  : (1, tH, W, 1)  output tile
    """
    tH = xa_ref.shape[1]
    W = xa_ref.shape[2]
    C = xa_ref.shape[3]

    h = pl.program_id(1)
    nh = pl.num_programs(1)

    w_all = w_ref[...]                                        # (C, 9)

    # Single MXU pass per input row: lane k of y holds the tap-k partial product.
    y_body = jnp.dot(xa_ref[0].reshape(tH * W, C), w_all,
                     preferred_element_type=jnp.float32)      # (tH*W, 9)
    y_top = jnp.dot(xt_ref[0].reshape(W, C), w_all,
                    preferred_element_type=jnp.float32)       # (W, 9)
    y_bot = jnp.dot(xb_ref[0].reshape(W, C), w_all,
                    preferred_element_type=jnp.float32)       # (W, 9)

    # padding=1 along H: zero the halo-row contributions at the image edges
    # (cheap: 9 lanes instead of 512 input channels).
    y_top = jnp.where(h == 0, 0.0, y_top)
    y_bot = jnp.where(h == nh - 1, 0.0, y_bot)

    # stack rows r = 0..tH+1 correspond to global image rows h*tH + r - 1
    y3 = jnp.concatenate([y_top, y_body, y_bot],
                         axis=0).reshape(tH + 2, W, K_TAPS)   # (tH+2, W, 9)

    # padding=1 along W: one zero-column-shifted slab per kx on the 9-lane partials.
    zcol = jnp.zeros((tH + 2, 1, K_TAPS), jnp.float32)
    slabs = (
        jnp.concatenate([zcol, y3[:, :W - 1, :]], axis=1),    # kx = -1
        y3,                                                   # kx =  0
        jnp.concatenate([y3[:, 1:, :], zcol], axis=1),        # kx = +1
    )

    # Recombine: out[h, w] = sum_k slabs[kx(k)][h + ky(k), w, k].
    # Select tap k's lane with a one-hot mask (pure VPU), sum, then lane-reduce.
    lane = lax.broadcasted_iota(jnp.int32, (tH, W, K_TAPS), 2)
    acc = None
    for ky in range(3):
        for kx in range(3):
            k = ky * 3 + kx
            term = jnp.where(lane == k, slabs[kx][ky:ky + tH, :, :], 0.0)
            acc = term if acc is None else acc + term

    out = jnp.sum(acc, axis=-1, keepdims=True) + b_ref[...]   # (tH, W, 1)
    o_ref[...] = out.reshape(1, tH, W, 1).astype(o_ref.dtype)


def _pick_tile_h(H, W, C, itemsize, budget_bytes=4 * 1024 * 1024):
    """Largest multiple-of-8 divisor of H whose (tH+2, W, C) block fits the budget."""
    if H % 8 != 0:
        return H                         # single tile along H; still a legal block
    cands = [t for t in range(8, H + 1, 8) if H % t == 0]
    fits = [t for t in cands if (t + 2) * W * C * itemsize <= budget_bytes]
    return max(fits) if fits else min(cands)


def discriminator_tail_forward(x_nchw, weight, bias, *, tile_h=None):
    """Forward of DiscriminatorTail(patch=True): Conv2d(512, 1, 3, stride=1, padding=1).

    x_nchw: (N, 512, H, W) f32; weight: (1, 512, 3, 3); bias: (1,).
    Returns (N, 1, H, W) f32 (matches the PyTorch module).
    """
    N, C, H, W = x_nchw.shape
    assert C == C_IN

    # TODO(synk): accept NHWC activations upstream to drop this single remaining
    # layout pass over the 512-channel input.
    x_nhwc = jnp.transpose(x_nchw, (0, 2, 3, 1))       # (N, H, W, C)

    if tile_h is None:
        tile_h = _pick_tile_h(H, W, C, x_nhwc.dtype.itemsize)
    assert H % tile_h == 0 and (tile_h == H or tile_h % 8 == 0)
    th = int(tile_h)
    n_h = H // th

    # combined weight: w_all[c, ky*3 + kx] = weight[0, c, ky, kx]
    w_all = weight.reshape(C, K_TAPS).astype(jnp.float32)
    b2 = bias.reshape(1, 1).astype(jnp.float32)

    in_specs = [
        # tile body rows
        pl.BlockSpec((1, th, W, C), lambda n, h: (n, h, 0, 0)),
        # halo row above (block size 1 -> index is the element row; clamped at edge)
        pl.BlockSpec((1, 1, W, C),
                     lambda n, h: (n, jnp.maximum(h * th - 1, 0), 0, 0)),
        # halo row below (clamped at edge)
        pl.BlockSpec((1, 1, W, C),
                     lambda n, h: (n, jnp.minimum((h + 1) * th, H - 1), 0, 0)),
        pl.BlockSpec((C, K_TAPS), lambda n, h: (0, 0)),
        pl.BlockSpec((1, 1), lambda n, h: (0, 0)),
    ]

    out = pl.pallas_call(
        _conv3x3_tail_kernel,
        out_shape=jax.ShapeDtypeStruct((N, H, W, 1), jnp.float32),
        grid_spec=pltpu.PrefetchScalarGridSpec(
            num_scalar_prefetch=0,
            grid=(N, n_h),
            in_specs=in_specs,
            out_specs=pl.BlockSpec((1, th, W, 1), lambda n, h: (n, h, 0, 0)),
        ),
        compiler_params=pltpu.CompilerParams(
            dimension_semantics=("parallel", "parallel"),
            vmem_limit_bytes=32 * 1024 * 1024),
    )(x_nhwc, x_nhwc, x_nhwc, w_all, b2)

    # (N, H, W, 1) -> (N, 1, H, W); moving a size-1 axis is layout-free
    return jnp.transpose(out, (0, 3, 1, 2))


if __name__ == "__main__":
    key = jax.random.PRNGKey(0)
    k_x, k_w, k_b = jax.random.split(key, 3)

    N, H, W = 2, 16, 16
    x = jax.random.normal(k_x, (N, C_IN, H, W), dtype=jnp.float32)
    # deterministic synthetic parameters (shapes from nn.Conv2d(512, 1, 3))
    weight = jax.random.normal(k_w, (1, C_IN, 3, 3), dtype=jnp.float32) * 0.02
    bias = jax.random.normal(k_b, (1,), dtype=jnp.float32) * 0.02

    # reference: XLA conv, NCHW / OIHW, padding=1
    y_ref = lax.conv_general_dilated(
        x, weight, window_strides=(1, 1), padding=((1, 1), (1, 1)),
        dimension_numbers=("NCHW", "OIHW", "NCHW")) + bias.reshape(1, 1, 1, 1)

    # forced H tiling: exercises the in-kernel halo / edge-zeroing path (grid (2, 2))
    y_tiled = jax.block_until_ready(
        discriminator_tail_forward(x, weight, bias, tile_h=8))
    np.testing.assert_allclose(np.asarray(y_tiled), np.asarray(y_ref),
                               rtol=1e-4, atol=1e-4)

    # auto tile size (single H tile at this small spatial extent; both edges zeroed)
    y_auto = jax.block_until_ready(discriminator_tail_forward(x, weight, bias))
    np.testing.assert_allclose(np.asarray(y_auto), np.asarray(y_ref),
                               rtol=1e-4, atol=1e-4)

    assert y_tiled.shape == (N, 1, H, W)
    print("KERNEL_OK")
</pallas_src>

<mosaic_0001>
module attributes {stable_mosaic.version = 11 : i64} {
  func.func @_conv3x3_tail_kernel(%arg0: i32, %arg1: i32, %arg2: memref<1x8x16x512xf32, #tpu.memory_space<vmem>>, %arg3: memref<1x1x16x512xf32, #tpu.memory_space<vmem>>, %arg4: memref<1x1x16x512xf32, #tpu.memory_space<vmem>>, %arg5: memref<512x9xf32, #tpu.memory_space<vmem>>, %arg6: memref<1x1xf32, #tpu.memory_space<vmem>>, %arg7: memref<1x8x16x1xf32, #tpu.memory_space<vmem>>) attributes {dimension_semantics = [#tpu.dimension_semantics<parallel>, #tpu.dimension_semantics<parallel>], iteration_bounds = array<i64: 2, 2>, scalar_prefetch = 0 : i64, scratch_operands = 0 : i64, tpu.core_type = #tpu.core_type<tc>, window_params = [{transform_indices = @transform_0, window_bounds = array<i64: 1, 8, 16, 512>}, {transform_indices = @transform_1, window_bounds = array<i64: 1, 1, 16, 512>}, {transform_indices = @transform_2, window_bounds = array<i64: 1, 1, 16, 512>}, {pipeline_mode = #tpu.pipeline_mode<synchronous>, transform_indices = @transform_3, window_bounds = array<i64: 512, 9>}, {pipeline_mode = #tpu.pipeline_mode<synchronous>, transform_indices = @transform_4, window_bounds = array<i64: 1, 1>}, {transform_indices = @transform_5, window_bounds = array<i64: 1, 8, 16, 1>}]} {
    %c0 = arith.constant 0 : index
    %c0_0 = arith.constant 0 : index
    %0 = vector.load %arg5[%c0, %c0_0] : memref<512x9xf32, #tpu.memory_space<vmem>>, vector<512x9xf32>
    %c0_1 = arith.constant 0 : index
    %c0_2 = arith.constant 0 : index
    %c0_3 = arith.constant 0 : index
    %c0_4 = arith.constant 0 : index
    %1 = vector.load %arg2[%c0_1, %c0_2, %c0_3, %c0_4] : memref<1x8x16x512xf32, #tpu.memory_space<vmem>>, vector<1x8x16x512xf32>
    %2 = vector.shape_cast %1 : vector<1x8x16x512xf32> to vector<8x16x512xf32>
    %3 = vector.shape_cast %2 : vector<8x16x512xf32> to vector<128x512xf32>
    %cst = arith.constant dense<0.000000e+00> : vector<128x9xf32>
    %4 = tpu.matmul %3, %0, %cst {dimension_numbers = #tpu.dot_dimension_numbers<[1], [0], [0], [1], [0, 0, 1, 1], [], []>} : vector<128x512xf32>, vector<512x9xf32>, vector<128x9xf32> -> vector<128x9xf32>
    %c0_5 = arith.constant 0 : index
    %c0_6 = arith.constant 0 : index
    %c0_7 = arith.constant 0 : index
    %c0_8 = arith.constant 0 : index
    %5 = vector.load %arg3[%c0_5, %c0_6, %c0_7, %c0_8] : memref<1x1x16x512xf32, #tpu.memory_space<vmem>>, vector<1x1x16x512xf32>
    %6 = vector.shape_cast %5 : vector<1x1x16x512xf32> to vector<1x16x512xf32>
    %7 = vector.shape_cast %6 : vector<1x16x512xf32> to vector<16x512xf32>
    %cst_9 = arith.constant dense<0.000000e+00> : vector<16x9xf32>
    %8 = tpu.matmul %7, %0, %cst_9 {dimension_numbers = #tpu.dot_dimension_numbers<[1], [0], [0], [1], [0, 0, 1, 1], [], []>} : vector<16x512xf32>, vector<512x9xf32>, vector<16x9xf32> -> vector<16x9xf32>
    %c0_10 = arith.constant 0 : index
    %c0_11 = arith.constant 0 : index
    %c0_12 = arith.constant 0 : index
    %c0_13 = arith.constant 0 : index
    %9 = vector.load %arg4[%c0_10, %c0_11, %c0_12, %c0_13] : memref<1x1x16x512xf32, #tpu.memory_space<vmem>>, vector<1x1x16x512xf32>
    %10 = vector.shape_cast %9 : vector<1x1x16x512xf32> to vector<1x16x512xf32>
    %11 = vector.shape_cast %10 : vector<1x16x512xf32> to vector<16x512xf32>
    %cst_14 = arith.constant dense<0.000000e+00> : vector<16x9xf32>
    %12 = tpu.matmul %11, %0, %cst_14 {dimension_numbers = #tpu.dot_dimension_numbers<[1], [0], [0], [1], [0, 0, 1, 1], [], []>} : vector<16x512xf32>, vector<512x9xf32>, vector<16x9xf32> -> vector<16x9xf32>
    %c0_i32 = arith.constant 0 : i32
    %13 = arith.cmpi eq, %arg1, %c0_i32 : i32
    %cst_15 = arith.constant 0.000000e+00 : f32
    %14 = vector.broadcast %cst_15 : f32 to vector<16x9xf32>
    %15 = arith.select %13, %14, %8 : vector<16x9xf32>
    %c1_i32 = arith.constant 1 : i32
    %16 = arith.cmpi eq, %arg1, %c1_i32 : i32
    %cst_16 = arith.constant 0.000000e+00 : f32
    %17 = vector.broadcast %cst_16 : f32 to vector<16x9xf32>
    %18 = arith.select %16, %17, %12 : vector<16x9xf32>
    %19 = tpu.concatenate %15, %4, %18 in 0 : vector<16x9xf32>, vector<128x9xf32>, vector<16x9xf32> -> vector<160x9xf32>
    %20 = vector.shape_cast %19 : vector<160x9xf32> to vector<10x16x9xf32>
    %cst_17 = arith.constant 0.000000e+00 : f32
    %21 = vector.broadcast %cst_17 : f32 to vector<10x1x9xf32>
    %22 = vector.extract_strided_slice %20 {offsets = [0, 0, 0], sizes = [10, 15, 9], strides = [1, 1, 1]} : vector<10x16x9xf32> to vector<10x15x9xf32>
    %23 = tpu.concatenate %21, %22 in 1 : vector<10x1x9xf32>, vector<10x15x9xf32> -> vector<10x16x9xf32>
    %24 = vector.extract_strided_slice %20 {offsets = [0, 1, 0], sizes = [10, 15, 9], strides = [1, 1, 1]} : vector<10x16x9xf32> to vector<10x15x9xf32>
    %25 = tpu.concatenate %24, %21 in 1 : vector<10x15x9xf32>, vector<10x1x9xf32> -> vector<10x16x9xf32>
    %26 = tpu.iota {dimensions = array<i32: 2>} : vector<8x16x9xi32>
    %c0_i32_18 = arith.constant 0 : i32
    %27 = vector.broadcast %c0_i32_18 : i32 to vector<8x16x9xi32>
    %28 = arith.cmpi eq, %26, %27 : vector<8x16x9xi32>
    %29 = vector.extract_strided_slice %23 {offsets = [0, 0, 0], sizes = [8, 16, 9], strides = [1, 1, 1]} : vector<10x16x9xf32> to vector<8x16x9xf32>
    %cst_19 = arith.constant 0.000000e+00 : f32
    %30 = vector.broadcast %cst_19 : f32 to vector<8x16x9xf32>
    %31 = arith.select %28, %29, %30 : vector<8x16x9xi1>, vector<8x16x9xf32>
    %c1_i32_20 = arith.constant 1 : i32
    %32 = vector.broadcast %c1_i32_20 : i32 to vector<8x16x9xi32>
    %33 = arith.cmpi eq, %26, %32 : vector<8x16x9xi32>
    %34 = vector.extract_strided_slice %20 {offsets = [0, 0, 0], sizes = [8, 16, 9], strides = [1, 1, 1]} : vector<10x16x9xf32> to vector<8x16x9xf32>
    %cst_21 = arith.constant 0.000000e+00 : f32
    %35 = vector.broadcast %cst_21 : f32 to vector<8x16x9xf32>
    %36 = arith.select %33, %34, %35 : vector<8x16x9xi1>, vector<8x16x9xf32>
    %37 = arith.addf %31, %36 : vector<8x16x9xf32>
    %c2_i32 = arith.constant 2 : i32
    %38 = vector.broadcast %c2_i32 : i32 to vector<8x16x9xi32>
    %39 = arith.cmpi eq, %26, %38 : vector<8x16x9xi32>
    %40 = vector.extract_strided_slice %25 {offsets = [0, 0, 0], sizes = [8, 16, 9], strides = [1, 1, 1]} : vector<10x16x9xf32> to vector<8x16x9xf32>
    %cst_22 = arith.constant 0.000000e+00 : f32
    %41 = vector.broadcast %cst_22 : f32 to vector<8x16x9xf32>
    %42 = arith.select %39, %40, %41 : vector<8x16x9xi1>, vector<8x16x9xf32>
    %43 = arith.addf %37, %42 : vector<8x16x9xf32>
    %c3_i32 = arith.constant 3 : i32
    %44 = vector.broadcast %c3_i32 : i32 to vector<8x16x9xi32>
    %45 = arith.cmpi eq, %26, %44 : vector<8x16x9xi32>
    %46 = vector.extract_strided_slice %23 {offsets = [1, 0, 0], sizes = [8, 16, 9], strides = [1, 1, 1]} : vector<10x16x9xf32> to vector<8x16x9xf32>
    %cst_23 = arith.constant 0.000000e+00 : f32
    %47 = vector.broadcast %cst_23 : f32 to vector<8x16x9xf32>
    %48 = arith.select %45, %46, %47 : vector<8x16x9xi1>, vector<8x16x9xf32>
    %49 = arith.addf %43, %48 : vector<8x16x9xf32>
    %c4_i32 = arith.constant 4 : i32
    %50 = vector.broadcast %c4_i32 : i32 to vector<8x16x9xi32>
    %51 = arith.cmpi eq, %26, %50 : vector<8x16x9xi32>
    %52 = vector.extract_strided_slice %20 {offsets = [1, 0, 0], sizes = [8, 16, 9], strides = [1, 1, 1]} : vector<10x16x9xf32> to vector<8x16x9xf32>
    %cst_24 = arith.constant 0.000000e+00 : f32
    %53 = vector.broadcast %cst_24 : f32 to vector<8x16x9xf32>
    %54 = arith.select %51, %52, %53 : vector<8x16x9xi1>, vector<8x16x9xf32>
    %55 = arith.addf %49, %54 : vector<8x16x9xf32>
    %c5_i32 = arith.constant 5 : i32
    %56 = vector.broadcast %c5_i32 : i32 to vector<8x16x9xi32>
    %57 = arith.cmpi eq, %26, %56 : vector<8x16x9xi32>
    %58 = vector.extract_strided_slice %25 {offsets = [1, 0, 0], sizes = [8, 16, 9], strides = [1, 1, 1]} : vector<10x16x9xf32> to vector<8x16x9xf32>
    %cst_25 = arith.constant 0.000000e+00 : f32
    %59 = vector.broadcast %cst_25 : f32 to vector<8x16x9xf32>
    %60 = arith.select %57, %58, %59 : vector<8x16x9xi1>, vector<8x16x9xf32>
    %61 = arith.addf %55, %60 : vector<8x16x9xf32>
    %c6_i32 = arith.constant 6 : i32
    %62 = vector.broadcast %c6_i32 : i32 to vector<8x16x9xi32>
    %63 = arith.cmpi eq, %26, %62 : vector<8x16x9xi32>
    %64 = vector.extract_strided_slice %23 {offsets = [2, 0, 0], sizes = [8, 16, 9], strides = [1, 1, 1]} : vector<10x16x9xf32> to vector<8x16x9xf32>
    %cst_26 = arith.constant 0.000000e+00 : f32
    %65 = vector.broadcast %cst_26 : f32 to vector<8x16x9xf32>
    %66 = arith.select %63, %64, %65 : vector<8x16x9xi1>, vector<8x16x9xf32>
    %67 = arith.addf %61, %66 : vector<8x16x9xf32>
    %c7_i32 = arith.constant 7 : i32
    %68 = vector.broadcast %c7_i32 : i32 to vector<8x16x9xi32>
    %69 = arith.cmpi eq, %26, %68 : vector<8x16x9xi32>
    %70 = vector.extract_strided_slice %20 {offsets = [2, 0, 0], sizes = [8, 16, 9], strides = [1, 1, 1]} : vector<10x16x9xf32> to vector<8x16x9xf32>
    %cst_27 = arith.constant 0.000000e+00 : f32
    %71 = vector.broadcast %cst_27 : f32 to vector<8x16x9xf32>
    %72 = arith.select %69, %70, %71 : vector<8x16x9xi1>, vector<8x16x9xf32>
    %73 = arith.addf %67, %72 : vector<8x16x9xf32>
    %c8_i32 = arith.constant 8 : i32
    %74 = vector.broadcast %c8_i32 : i32 to vector<8x16x9xi32>
    %75 = arith.cmpi eq, %26, %74 : vector<8x16x9xi32>
    %76 = vector.extract_strided_slice %25 {offsets = [2, 0, 0], sizes = [8, 16, 9], strides = [1, 1, 1]} : vector<10x16x9xf32> to vector<8x16x9xf32>
    %cst_28 = arith.constant 0.000000e+00 : f32
    %77 = vector.broadcast %cst_28 : f32 to vector<8x16x9xf32>
    %78 = arith.select %75, %76, %77 : vector<8x16x9xi1>, vector<8x16x9xf32>
    %79 = arith.addf %73, %78 : vector<8x16x9xf32>
    %cst_29 = arith.constant dense<0.000000e+00> : vector<8x16xf32>
    %80 = vector.multi_reduction <add>, %79, %cst_29 [2] : vector<8x16x9xf32> to vector<8x16xf32>
    %81 = vector.shape_cast %80 : vector<8x16xf32> to vector<8x16x1xf32>
    %c0_30 = arith.constant 0 : index
    %c0_31 = arith.constant 0 : index
    %82 = vector.load %arg6[%c0_30, %c0_31] : memref<1x1xf32, #tpu.memory_space<vmem>>, vector<1x1xf32>
    %83 = vector.shape_cast %82 : vector<1x1xf32> to vector<1x1x1xf32>
    %84 = vector.broadcast %83 : vector<1x1x1xf32> to vector<8x16x1xf32>
    %85 = arith.addf %81, %84 : vector<8x16x1xf32>
    %86 = vector.shape_cast %85 : vector<8x16x1xf32> to vector<1x8x16x1xf32>
    %c0_32 = arith.constant 0 : index
    %c0_33 = arith.constant 0 : index
    %c0_34 = arith.constant 0 : index
    %c0_35 = arith.constant 0 : index
    %87 = vector.load %arg7[%c0_32, %c0_33, %c0_34, %c0_35] : memref<1x8x16x1xf32, #tpu.memory_space<vmem>>, vector<1x8x16x1xf32>
    tpu.vector_store %arg7[%c0_32, %c0_33, %c0_34, %c0_35], %86 {strides = array<i32>} : memref<1x8x16x1xf32, #tpu.memory_space<vmem>>, vector<1x8x16x1xf32>,
    return
  }
  func.func @transform_0(%arg0: i32, %arg1: i32) -> (i32, i32, i32, i32) {
    %c0_i32 = arith.constant 0 : i32
    %c0_i32_0 = arith.constant 0 : i32
    %c0_i32_1 = arith.constant 0 : i32
    return %arg0, %arg1, %c0_i32, %c0_i32_0 : i32, i32, i32, i32
  }
  func.func @transform_1(%arg0: i32, %arg1: i32) -> (i32, i32, i32, i32) {
    %c8_i32 = arith.constant 8 : i32
    %0 = arith.muli %arg1, %c8_i32 : i32
    %c1_i32 = arith.constant 1 : i32
    %1 = arith.subi %0, %c1_i32 : i32
    %c0_i32 = arith.constant 0 : i32
    %2 = arith.maxsi %1, %c0_i32 : i32
    %c0_i32_0 = arith.constant 0 : i32
    %c0_i32_1 = arith.constant 0 : i32
    %c0_i32_2 = arith.constant 0 : i32
    return %arg0, %2, %c0_i32_0, %c0_i32_1 : i32, i32, i32, i32
  }
  func.func @transform_2(%arg0: i32, %arg1: i32) -> (i32, i32, i32, i32) {
    %c1_i32 = arith.constant 1 : i32
    %0 = arith.addi %arg1, %c1_i32 : i32
    %c8_i32 = arith.constant 8 : i32
    %1 = arith.muli %0, %c8_i32 : i32
    %c15_i32 = arith.constant 15 : i32
    %2 = arith.minsi %1, %c15_i32 : i32
    %c0_i32 = arith.constant 0 : i32
    %c0_i32_0 = arith.constant 0 : i32
    %c0_i32_1 = arith.constant 0 : i32
    return %arg0, %2, %c0_i32, %c0_i32_0 : i32, i32, i32, i32
  }
  func.func @transform_3(%arg0: i32, %arg1: i32) -> (i32, i32) {
    %c0_i32 = arith.constant 0 : i32
    %c0_i32_0 = arith.constant 0 : i32
    %c0_i32_1 = arith.constant 0 : i32
    return %c0_i32, %c0_i32_0 : i32, i32
  }
  func.func @transform_4(%arg0: i32, %arg1: i32) -> (i32, i32) {
    %c0_i32 = arith.constant 0 : i32
    %c0_i32_0 = arith.constant 0 : i32
    %c0_i32_1 = arith.constant 0 : i32
    return %c0_i32, %c0_i32_0 : i32, i32
  }
  func.func @transform_5(%arg0: i32, %arg1: i32) -> (i32, i32, i32, i32) {
    %c0_i32 = arith.constant 0 : i32
    %c0_i32_0 = arith.constant 0 : i32
    %c0_i32_1 = arith.constant 0 : i32
    return %arg0, %arg1, %c0_i32, %c0_i32_0 : i32, i32, i32, i32
  }
}

</mosaic_0001>

<llo_original>
// kernel: tpu_custom_call.1
$region0: #{tpu_custom_call.1}
  #allocation0 [shape = 'u32[]', space=smem, size = 0x4, offset = 0x4, fixed_abs, tag = 'smem constant byte address 0x4 - core index']
  #allocation1 [shape = 'u32[144,128]{1,0:T(1,128)}', space=vmem, size = 0x12000, scoped, tag = 'internal scratch']
  #allocation2 [shape = 'f32[1,1]{1,0:T(1,128)S(1)}', space=vmem, size = 0x200, scoped, tag = 'scoped memory for tpu_custom_call.1']
  %s0 = inlined_call_operand.hbm [shape: f32[2,16,16,512], index: 0, kind: input, shape index: {}]
  %s1 = inlined_call_operand.hbm [shape: f32[2,16,16,512], index: 1, kind: input, shape index: {}]
  %s2 = inlined_call_operand.hbm [shape: f32[2,16,16,512], index: 2, kind: input, shape index: {}]
  %s3 = inlined_call_operand.vmem [shape: f32[512,9], index: 3, kind: input, shape index: {}]
  %s4 = inlined_call_operand.<no memory space> [shape: f32[1,1], index: 4, kind: input, shape index: {}]
  %s5 = inlined_call_operand.vmem [shape: f32[2,16,16,1], index: 5, kind: output, shape index: {}]
  %s6 = sld [smem:[#allocation0]]
  $region65: #{tpu_custom_call.1} parent=0
    _
  %s8 = ssub.s32 1, %s6
  %s9 = scalar_select 0, %s8, %s6
  %v10 = vstv %s4
  %11 = vst [vmem:[#allocation2] sm:$0x1] %v10
  $region1: #{tpu_custom_call.1} parent=0
    #allocation3 [shape = 'u8[524288]{0}', space=vmem, size = 0x80000, scoped, tag = 'input window, operand 0']
    #allocation4 [shape = 's32[2]{0}', space=sflag, size = 0x8, scoped, tag = 'scoped memory for tpu_custom_call.1']
    #allocation5 [shape = 'u8[65536]{0}', space=vmem, size = 0x10000, scoped, tag = 'input window, operand 1']
    #allocation6 [shape = 's32[2]{0}', space=sflag, size = 0x8, scoped, tag = 'scoped memory for tpu_custom_call.1']
    #allocation7 [shape = 'u8[65536]{0}', space=vmem, size = 0x10000, scoped, tag = 'input window, operand 2']
    %12 = vsyncpa [#allocation4], 0
    %s13 = scalar_lea.sflag [#allocation4], 1
    %14 = vsyncpa %s13, 0
    %15 = vsyncpa [#allocation6], 0
    %s16 = scalar_lea.sflag [#allocation6], 1
    %17 = vsyncpa %s16, 0
    loop: start=0, step=1, limit=6
    $region2: #{tpu_custom_call.1} parent=1 // loop_pre_header
      _
    $region3: #{tpu_custom_call.1} parent=1 // loop_header
      %s19 = sphi 0, %s23
      %p20 = scmp.ge.s32.totalorder %s19, 6
      %s26 = sphi 0, %s38
      %s27 = sphi 0, %s34
      %s28 = sphi 0, %s26
      %s29 = sphi 0, %s27
      %s30 = sphi 0, %s28
      %s31 = sphi 0, %s29
      %s43 = sphi 0, %s45
      %s46 = sphi 0, %s43
      %s47 = sphi 0, %s46
      %s63 = sphi 0, %s47
      %s79 = sphi 0, %s81
      %s82 = sphi 0, %s79
      %s83 = sphi 0, %s82
      %s99 = sphi 0, %s83
      %s115 = sphi 0, %s117
      %s118 = sphi 0, %s115
      %s119 = sphi 0, %s118
      %s135 = sphi 0, %s119
      %s139 = sphi 0, %s139
      %s141 = sphi 0, %s139
      %s142 = sphi 0, %s141
      %s156 = sphi 0, %s142
      %s160 = sphi 0, %s160
      %s162 = sphi 0, %s160
      %s163 = sphi 0, %s162
      %s177 = sphi 0, %s163
      %s185 = sphi 0, %s187
      %s188 = sphi 0, %s185
      %s189 = sphi 0, %s188
      %s205 = sphi 0, %s189
    $region4: #{tpu_custom_call.1} parent=1 // loop_header_branch
      %22 = sbr.rel (%p20) target = $region8
    $region5: #{tpu_custom_call.1} parent=1 // loop_body
      %s24 = ssub.s32 %s19, 1
      %s25 = ssub.s32 %s19, 2
      %s32 = sadd.s32 1, %s27
      %p33 = scmp.ge.s32.totalorder %s32, 2
      %s34 = scalar_select %p33, 0, %s32
      %s35 = sadd.s32 1, %s26
      %s36 = scalar_select %p33, %s35, %s26
      %p37 = scmp.ge.s32.totalorder %s36, 2
      %s38 = scalar_select %p37, 0, %s36
      %s39 = ssub.s32 %s26, %s38
      %s40 = ssub.s32 %s27, %s34
      %s41 = sor.u32 %s39, %s40
      %p42 = scmp.eq.s32.totalorder %s41, 0
      %s44 = sadd.s32 %s43, 1
      %s45 = scalar_select %p42, %s43, %s44
      %p48 = pneg %p42
      %p49 = scmp.eq.s32.totalorder %s19, 3
      %p50 = por %p48, %p49
      %p51 = scmp.ne.s32.totalorder %s43, %s46
      %p52 = scmp.eq.s32.totalorder %s19, 0
      %p53 = por %p51, %p52
      %p54 = scmp.ne.s32.totalorder %s43, %s46
      %p55 = scmp.eq.s32.totalorder %s24, 3
      %p56 = por %p54, %p55
      %p57 = scmp.ne.s32.totalorder %s46, %s47
      %p58 = scmp.eq.s32.totalorder %s24, 0
      %p59 = por %p57, %p58
      %p60 = scmp.ne.s32.totalorder %s46, %s47
      %p61 = scmp.eq.s32.totalorder %s25, 3
      %p62 = por %p60, %p61
      %p64 = scmp.ne.s32.totalorder %s47, %s63
      %p65 = scmp.eq.s32.totalorder %s25, 0
      %p66 = por %p64, %p65
      %s67 = smul.u32 %s27, 8
      %s68 = ssub.s32 %s67, 1
      %p69 = scmp.gt.s32.totalorder %s68, 0
      %s70 = scalar_select %p69, %s68, 0
      %s71 = smul.u32 %s34, 8
      %s72 = ssub.s32 %s71, 1
      %p73 = scmp.gt.s32.totalorder %s72, 0
      %s74 = scalar_select %p73, %s72, 0
      %s75 = ssub.s32 %s26, %s38
      %s76 = ssub.s32 %s70, %s74
      %s77 = sor.u32 %s75, %s76
      %p78 = scmp.eq.s32.totalorder %s77, 0
      %s80 = sadd.s32 %s79, 1
      %s81 = scalar_select %p78, %s79, %s80
      %p84 = pneg %p78
      %p85 = scmp.eq.s32.totalorder %s19, 3
      %p86 = por %p84, %p85
      %p87 = scmp.ne.s32.totalorder %s79, %s82
      %p88 = scmp.eq.s32.totalorder %s19, 0
      %p89 = por %p87, %p88
      %p90 = scmp.ne.s32.totalorder %s79, %s82
      %p91 = scmp.eq.s32.totalorder %s24, 3
      %p92 = por %p90, %p91
      %p93 = scmp.ne.s32.totalorder %s82, %s83
      %p94 = scmp.eq.s32.totalorder %s24, 0
      %p95 = por %p93, %p94
      %p96 = scmp.ne.s32.totalorder %s82, %s83
      %p97 = scmp.eq.s32.totalorder %s25, 3
      %p98 = por %p96, %p97
      %p100 = scmp.ne.s32.totalorder %s83, %s99
      %p101 = scmp.eq.s32.totalorder %s25, 0
      %p102 = por %p100, %p101
      %s103 = sadd.s32 %s27, 1
      %s104 = smul.u32 %s103, 8
      %p105 = scmp.lt.s32.totalorder %s104, 15
      %s106 = scalar_select %p105, %s104, 15
      %s107 = sadd.s32 %s34, 1
      %s108 = smul.u32 %s107, 8
      %p109 = scmp.lt.s32.totalorder %s108, 15
      %s110 = scalar_select %p109, %s108, 15
      %s111 = ssub.s32 %s26, %s38
      %s112 = ssub.s32 %s106, %s110
      %s113 = sor.u32 %s111, %s112
      %p114 = scmp.eq.s32.totalorder %s113, 0
      %s116 = sadd.s32 %s115, 1
      %s117 = scalar_select %p114, %s115, %s116
      %p120 = pneg %p114
      %p121 = scmp.eq.s32.totalorder %s19, 3
      %p122 = por %p120, %p121
      %p123 = scmp.ne.s32.totalorder %s115, %s118
      %p124 = scmp.eq.s32.totalorder %s19, 0
      %p125 = por %p123, %p124
      %p126 = scmp.ne.s32.totalorder %s115, %s118
      %p127 = scmp.eq.s32.totalorder %s24, 3
      %p128 = por %p126, %p127
      %p129 = scmp.ne.s32.totalorder %s118, %s119
      %p130 = scmp.eq.s32.totalorder %s24, 0
      %p131 = por %p129, %p130
      %p132 = scmp.ne.s32.totalorder %s118, %s119
      %p133 = scmp.eq.s32.totalorder %s25, 3
      %p134 = por %p132, %p133
      %p136 = scmp.ne.s32.totalorder %s119, %s135
      %p137 = scmp.eq.s32.totalorder %s25, 0
      %p138 = por %p136, %p137
      %s140 = sadd.s32 %s139, 1
      %p143 = scmp.eq.s32.totalorder %s19, 3
      %p144 = scmp.ne.s32.totalorder %s139, %s141
      %p145 = scmp.eq.s32.totalorder %s19, 0
      %p146 = por %p144, %p145
      %p147 = scmp.ne.s32.totalorder %s139, %s141
      %p148 = scmp.eq.s32.totalorder %s24, 3
      %p149 = por %p147, %p148
      %p150 = scmp.ne.s32.totalorder %s141, %s142
      %p151 = scmp.eq.s32.totalorder %s24, 0
      %p152 = por %p150, %p151
      %p153 = scmp.ne.s32.totalorder %s141, %s142
      %p154 = scmp.eq.s32.totalorder %s25, 3
      %p155 = por %p153, %p154
      %p157 = scmp.ne.s32.totalorder %s142, %s156
      %p158 = scmp.eq.s32.totalorder %s25, 0
      %p159 = por %p157, %p158
      %s161 = sadd.s32 %s160, 1
      %p164 = scmp.eq.s32.totalorder %s19, 3
      %p165 = scmp.ne.s32.totalorder %s160, %s162
      %p166 = scmp.eq.s32.totalorder %s19, 0
      %p167 = por %p165, %p166
      %p168 = scmp.ne.s32.totalorder %s160, %s162
      %p169 = scmp.eq.s32.totalorder %s24, 3
      %p170 = por %p168, %p169
      %p171 = scmp.ne.s32.totalorder %s162, %s163
      %p172 = scmp.eq.s32.totalorder %s24, 0
      %p173 = por %p171, %p172
      %p174 = scmp.ne.s32.totalorder %s162, %s163
      %p175 = scmp.eq.s32.totalorder %s25, 3
      %p176 = por %p174, %p175
      %p178 = scmp.ne.s32.totalorder %s163, %s177
      %p179 = scmp.eq.s32.totalorder %s25, 0
      %p180 = por %p178, %p179
      %s181 = ssub.s32 %s26, %s38
      %s182 = ssub.s32 %s27, %s34
      %s183 = sor.u32 %s181, %s182
      %p184 = scmp.eq.s32.totalorder %s183, 0
      %s186 = sadd.s32 %s185, 1
      %s187 = scalar_select %p184, %s185, %s186
      %p190 = pneg %p184
      %p191 = scmp.eq.s32.totalorder %s19, 3
      %p192 = por %p190, %p191
      %p193 = scmp.ne.s32.totalorder %s185, %s188
      %p194 = scmp.eq.s32.totalorder %s19, 0
      %p195 = por %p193, %p194
      %p196 = scmp.ne.s32.totalorder %s185, %s188
      %p197 = scmp.eq.s32.totalorder %s24, 3
      %p198 = por %p196, %p197
      %p199 = scmp.ne.s32.totalorder %s188, %s189
      %p200 = scmp.eq.s32.totalorder %s24, 0
      %p201 = por %p199, %p200
      %p202 = scmp.ne.s32.totalorder %s188, %s189
      %p203 = scmp.eq.s32.totalorder %s25, 3
      %p204 = por %p202, %p203
      %p206 = scmp.ne.s32.totalorder %s189, %s205
      %p207 = scmp.eq.s32.totalorder %s25, 0
      %p208 = por %p206, %p207
      %p209 = scmp.le.s32.totalorder 1, %s19
      %p210 = scmp.lt.s32.totalorder %s19, 5
      %p211 = pnand %p209, %p210
      %p212 = pneg %p211
      // Predicated region
      $region9: #{tpu_custom_call.1} parent=5 // pred_check
        _
      $region10: #{tpu_custom_call.1} parent=5 // pred_check_branch
        %214 = sbr.rel (%p211) target = $region12
      $region11: #{tpu_custom_call.1} parent=5 // pred_region
        %s215 = ssub.s32 %s19, 1
        // Predicated region
        $region13: #{tpu_custom_call.1} parent=11 // pred_check
          %p216 = pneg %p152
        $region14: #{tpu_custom_call.1} parent=11 // pred_check_branch
          %218 = sbr.rel (%p216) target = $region16
        $region15: #{tpu_custom_call.1} parent=11 // pred_region
          _
        $region16: #{tpu_custom_call.1} parent=11 // pred_fallthru
          _
        // Predicated region
        $region17: #{tpu_custom_call.1} parent=11 // pred_check
          %p219 = pneg %p173
        $region18: #{tpu_custom_call.1} parent=11 // pred_check_branch
          %221 = sbr.rel (%p219) target = $region20
        $region19: #{tpu_custom_call.1} parent=11 // pred_region
          _
        $region20: #{tpu_custom_call.1} parent=11 // pred_fallthru
          _
      $region12: #{tpu_custom_call.1} parent=5 // pred_fallthru
        _
      %p222 = scmp.lt.s32.totalorder %s19, 4
      // Predicated region
      $region21: #{tpu_custom_call.1} parent=5 // pred_check
        %p223 = pneg %p222
      $region22: #{tpu_custom_call.1} parent=5 // pred_check_branch
        %225 = sbr.rel (%p223) target = $region24
      $region23: #{tpu_custom_call.1} parent=5 // pred_region
        // Predicated region
        $region25: #{tpu_custom_call.1} parent=23 // pred_check
          %p226 = pneg %p53
        $region26: #{tpu_custom_call.1} parent=23 // pred_check_branch
          %228 = sbr.rel (%p226) target = $region28
        $region27: #{tpu_custom_call.1} parent=23 // pred_region
          %s229 = sand.u32 %s43, 1
          %s230 = scalar_lea.sflag [#allocation4], %s229
          %s231 = sand.u32 %s43, 1
          %s232 = smul.addr %s231, 512
          %s233 = scalar_lea.vmem [#allocation3], %s232
          %s234 = smul.u32 8, %s27
          %s236 = ssub.s32 8192, 8192
          %237 = vsyncadd %s230, %s236
          %s238 = smul.addr %s234, 8
          %s239 = smul.addr %s26, 128
          %s240 = sadd.s32 %s238, %s239
          %s241 = smul.addr %s240, 128
          %s242 = scalar_lea.hbm %s0, %s241
          %s243 = sshll.u32 %s233, 4
          %s244 = int_to_ptr.vmem [resolvable:$true] %s243
          %249 = dma.hbm_to_vmem [thread:$0]  %s242, 8192, %s244, %s230, 512, 512, 32
        $region28: #{tpu_custom_call.1} parent=23 // pred_fallthru
          _
        // Predicated region
        $region29: #{tpu_custom_call.1} parent=23 // pred_check
          %p250 = pneg %p89
        $region30: #{tpu_custom_call.1} parent=23 // pred_check_branch
          %252 = sbr.rel (%p250) target = $region32
        $region31: #{tpu_custom_call.1} parent=23 // pred_region
          %s253 = sand.u32 %s19, 1
          %s254 = scalar_lea.sflag [#allocation6], %s253
          %s255 = sand.u32 %s79, 1
          %s256 = smul.addr %s255, 64
          %s257 = scalar_lea.vmem [#allocation5], %s256
          %s258 = smul.u32 %s27, 8
          %s259 = ssub.s32 %s258, 1
          %p260 = scmp.gt.s32.totalorder %s259, 0
          %s261 = scalar_select %p260, %s259, 0
          %s263 = ssub.s32 1024, 1024
          %264 = vsyncadd %s254, %s263
          %s265 = smul.addr %s261, 8
          %s266 = smul.addr %s26, 128
          %s267 = sadd.s32 %s265, %s266
          %s268 = smul.addr %s267, 128
          %s269 = scalar_lea.hbm %s1, %s268
          %s270 = sshll.u32 %s257, 4
          %s271 = int_to_ptr.vmem [resolvable:$true] %s270
          %276 = dma.hbm_to_vmem [thread:$0]  %s269, 1024, %s271, %s254, 512, 512, 32
        $region32: #{tpu_custom_call.1} parent=23 // pred_fallthru
          _
        // Predicated region
        $region33: #{tpu_custom_call.1} parent=23 // pred_check
          %p277 = pneg %p125
        $region34: #{tpu_custom_call.1} parent=23 // pred_check_branch
          %279 = sbr.rel (%p277) target = $region36
        $region35: #{tpu_custom_call.1} parent=23 // pred_region
          %s280 = sand.u32 %s19, 1
          %s281 = scalar_lea.sflag [#allocation6], %s280
          %s282 = sand.u32 %s115, 1
          %s283 = smul.addr %s282, 64
          %s284 = scalar_lea.vmem [#allocation7], %s283
          %s285 = sadd.s32 %s27, 1
          %s286 = smul.u32 %s285, 8
          %p287 = scmp.lt.s32.totalorder %s286, 15
          %s288 = scalar_select %p287, %s286, 15
          %s290 = ssub.s32 1024, 1024
          %291 = vsyncadd %s281, %s290
          %s292 = smul.addr %s288, 8
          %s293 = smul.addr %s26, 128
          %s294 = sadd.s32 %s292, %s293
          %s295 = smul.addr %s294, 128
          %s296 = scalar_lea.hbm %s2, %s295
          %s297 = sshll.u32 %s284, 4
          %s298 = int_to_ptr.vmem [resolvable:$true] %s297
          %303 = dma.hbm_to_vmem [thread:$0]  %s296, 1024, %s298, %s281, 512, 512, 32
        $region36: #{tpu_custom_call.1} parent=23 // pred_fallthru
          _
      $region24: #{tpu_custom_call.1} parent=5 // pred_fallthru
        _
      %p304 = scmp.le.s32.totalorder 1, %s19
      %p305 = scmp.lt.s32.totalorder %s19, 5
      %p306 = pnand %p304, %p305
      %p307 = pneg %p306
      // Predicated region
      $region37: #{tpu_custom_call.1} parent=5 // pred_check
        _
      $region38: #{tpu_custom_call.1} parent=5 // pred_check_branch
        %309 = sbr.rel (%p306) target = $region40
      $region39: #{tpu_custom_call.1} parent=5 // pred_region
        %s310 = ssub.s32 %s19, 1
        %s311 = sand.u32 %s46, 1
        %s312 = scalar_lea.sflag [#allocation4], %s311
        %s313 = sand.u32 %s46, 1
        %s314 = smul.addr %s313, 512
        %s315 = scalar_lea.vmem [#allocation3], %s314
        // Predicated region
        $region41: #{tpu_custom_call.1} parent=39 // pred_check
          %p316 = pneg %p59
        $region42: #{tpu_custom_call.1} parent=39 // pred_check_branch
          %318 = sbr.rel (%p316) target = $region44
        $region43: #{tpu_custom_call.1} parent=39 // pred_region
          %319 = dma.done %s312, 8192
        $region44: #{tpu_custom_call.1} parent=39 // pred_fallthru
          _
        %s320 = sand.u32 %s24, 1
        %s321 = scalar_lea.sflag [#allocation6], %s320
        %s322 = sand.u32 %s82, 1
        %s323 = smul.addr %s322, 64
        %s324 = scalar_lea.vmem [#allocation5], %s323
        // Predicated region
        $region45: #{tpu_custom_call.1} parent=39 // pred_check
          %p325 = pneg %p95
        $region46: #{tpu_custom_call.1} parent=39 // pred_check_branch
          %327 = sbr.rel (%p325) target = $region48
        $region47: #{tpu_custom_call.1} parent=39 // pred_region
          %328 = dma.done %s321, 1024
        $region48: #{tpu_custom_call.1} parent=39 // pred_fallthru
          _
        %s329 = sand.u32 %s24, 1
        %s330 = scalar_lea.sflag [#allocation6], %s329
        %s331 = sand.u32 %s118, 1
        %s332 = smul.addr %s331, 64
        %s333 = scalar_lea.vmem [#allocation7], %s332
        // Predicated region
        $region49: #{tpu_custom_call.1} parent=39 // pred_check
          %p334 = pneg %p131
        $region50: #{tpu_custom_call.1} parent=39 // pred_check_branch
          %336 = sbr.rel (%p334) target = $region52
        $region51: #{tpu_custom_call.1} parent=39 // pred_region
          %337 = dma.done %s330, 1024
        $region52: #{tpu_custom_call.1} parent=39 // pred_fallthru
          _
        %s338 = sand.u32 %s46, 1
        %s339 = scalar_lea.sflag [#allocation4], %s338
        %s340 = sand.u32 %s46, 1
        %s341 = smul.addr %s340, 512
        %s342 = scalar_lea.vmem [#allocation3], %s341
        %p343 = pneg %p59
        %p344 = pneg %p56
        %s345 = sand.u32 %s24, 1
        %s346 = scalar_lea.sflag [#allocation6], %s345
        %s347 = sand.u32 %s82, 1
        %s348 = smul.addr %s347, 64
        %s349 = scalar_lea.vmem [#allocation5], %s348
        %p350 = pneg %p95
        %p351 = pneg %p92
        %s352 = sand.u32 %s24, 1
        %s353 = scalar_lea.sflag [#allocation6], %s352
        %s354 = sand.u32 %s118, 1
        %s355 = smul.addr %s354, 64
        %s356 = scalar_lea.vmem [#allocation7], %s355
        %p357 = pneg %p131
        %p358 = pneg %p128
        %p359 = pneg %p152
        %p360 = pneg %p149
        %p361 = pneg %p173
        %p362 = pneg %p170
        %p363 = pneg %p201
        %p364 = pneg %p198
        %s365 = smul.u32 8, %s29
        %p366 = scmp.lt.s32.totalorder %s28, 1
        %s367 = scalar_select %p366, %s28, 1
        %p368 = scmp.lt.s32.totalorder %s365, 15
        %s369 = scalar_select %p368, %s365, 15
        %s370 = smul.addr %s369, 2
        %s371 = smul.addr %s367, 32
        %s372 = sadd.s32 %s370, %s371
        %s373 = smul.addr %s372, 8
        %s374 = scalar_lea.vmem %s5, %s373
        %s375 = smul.u32 8, %s29
        %s376 = smul.u32 %s29, 8
        %s377 = ssub.s32 %s376, 1
        %p378 = scmp.gt.s32.totalorder %s377, 0
        %s379 = scalar_select %p378, %s377, 0
        %s380 = sadd.s32 %s29, 1
        %s381 = smul.u32 %s380, 8
        %p382 = scmp.lt.s32.totalorder %s381, 15
        %s383 = scalar_select %p382, %s381, 15
        %s384 = smul.u32 8, %s29
        %p385 = scmp.lt.s32.totalorder %s28, 1
        %s386 = scalar_select %p385, %s28, 1
        %p387 = scmp.lt.s32.totalorder %s384, 15
        %s388 = scalar_select %p387, %s384, 15
        %s389 = smul.addr %s388, 2
        %s390 = smul.addr %s386, 32
        %s391 = sadd.s32 %s389, %s390
        %s392 = smul.addr %s391, 8
        %s393 = scalar_lea.vmem %s5, %s392
        %s394 = smul.u32 8, %s29
        %v395 = vld [vmem:[%s3] sm:$0xff]
        %v396 = vld [vmem:[%s3 + $0x8] sm:$0xff]
        %v397 = vld [vmem:[%s3 + $0x10] sm:$0xff]
        %v398 = vld [vmem:[%s3 + $0x18] sm:$0xff]
        %v399 = vld [vmem:[%s3 + $0x20] sm:$0xff]
        %v400 = vld [vmem:[%s3 + $0x28] sm:$0xff]
        %v401 = vld [vmem:[%s3 + $0x30] sm:$0xff]
        %v402 = vld [vmem:[%s3 + $0x38] sm:$0xff]
        %v403 = vld [vmem:[%s3 + $0x40] sm:$0xff]
        %v404 = vld [vmem:[%s3 + $0x48] sm:$0xff]
        %v405 = vld [vmem:[%s3 + $0x50] sm:$0xff]
        %v406 = vld [vmem:[%s3 + $0x58] sm:$0xff]
        %v407 = vld [vmem:[%s3 + $0x60] sm:$0xff]
        %v408 = vld [vmem:[%s3 + $0x68] sm:$0xff]
        %v409 = vld [vmem:[%s3 + $0x70] sm:$0xff]
        %v410 = vld [vmem:[%s3 + $0x78] sm:$0xff]
        %v411 = vld [vmem:[%s3 + $0x80] sm:$0xff]
        %v412 = vld [vmem:[%s3 + $0x88] sm:$0xff]
        %v413 = vld [vmem:[%s3 + $0x90] sm:$0xff]
        %v414 = vld [vmem:[%s3 + $0x98] sm:$0xff]
        %v415 = vld [vmem:[%s3 + $0xa0] sm:$0xff]
        %v416 = vld [vmem:[%s3 + $0xa8] sm:$0xff]
        %v417 = vld [vmem:[%s3 + $0xb0] sm:$0xff]
        %v418 = vld [vmem:[%s3 + $0xb8] sm:$0xff]
        %v419 = vld [vmem:[%s3 + $0xc0] sm:$0xff]
        %v420 = vld [vmem:[%s3 + $0xc8] sm:$0xff]
        %v421 = vld [vmem:[%s3 + $0xd0] sm:$0xff]
        %v422 = vld [vmem:[%s3 + $0xd8] sm:$0xff]
        %v423 = vld [vmem:[%s3 + $0xe0] sm:$0xff]
        %v424 = vld [vmem:[%s3 + $0xe8] sm:$0xff]
        %v425 = vld [vmem:[%s3 + $0xf0] sm:$0xff]
        %v426 = vld [vmem:[%s3 + $0xf8] sm:$0xff]
        %v427 = vld [vmem:[%s3 + $0x100] sm:$0xff]
        %v428 = vld [vmem:[%s3 + $0x108] sm:$0xff]
        %v429 = vld [vmem:[%s3 + $0x110] sm:$0xff]
        %v430 = vld [vmem:[%s3 + $0x118] sm:$0xff]
        %v431 = vld [vmem:[%s3 + $0x120] sm:$0xff]
        %v432 = vld [vmem:[%s3 + $0x128] sm:$0xff]
        %v433 = vld [vmem:[%s3 + $0x130] sm:$0xff]
        %v434 = vld [vmem:[%s3 + $0x138] sm:$0xff]
        %v435 = vld [vmem:[%s3 + $0x140] sm:$0xff]
        %v436 = vld [vmem:[%s3 + $0x148] sm:$0xff]
        %v437 = vld [vmem:[%s3 + $0x150] sm:$0xff]
        %v438 = vld [vmem:[%s3 + $0x158] sm:$0xff]
        %v439 = vld [vmem:[%s3 + $0x160] sm:$0xff]
        %v440 = vld [vmem:[%s3 + $0x168] sm:$0xff]
        %v441 = vld [vmem:[%s3 + $0x170] sm:$0xff]
        %v442 = vld [vmem:[%s3 + $0x178] sm:$0xff]
        %v443 = vld [vmem:[%s3 + $0x180] sm:$0xff]
        %v444 = vld [vmem:[%s3 + $0x188] sm:$0xff]
        %v445 = vld [vmem:[%s3 + $0x190] sm:$0xff]
        %v446 = vld [vmem:[%s3 + $0x198] sm:$0xff]
        %v447 = vld [vmem:[%s3 + $0x1a0] sm:$0xff]
        %v448 = vld [vmem:[%s3 + $0x1a8] sm:$0xff]
        %v449 = vld [vmem:[%s3 + $0x1b0] sm:$0xff]
        %v450 = vld [vmem:[%s3 + $0x1b8] sm:$0xff]
        %v451 = vld [vmem:[%s3 + $0x1c0] sm:$0xff]
        %v452 = vld [vmem:[%s3 + $0x1c8] sm:$0xff]
        %v453 = vld [vmem:[%s3 + $0x1d0] sm:$0xff]
        %v454 = vld [vmem:[%s3 + $0x1d8] sm:$0xff]
        %v455 = vld [vmem:[%s3 + $0x1e0] sm:$0xff]
        %v456 = vld [vmem:[%s3 + $0x1e8] sm:$0xff]
        %v457 = vld [vmem:[%s3 + $0x1f0] sm:$0xff]
        %v458 = vld [vmem:[%s3 + $0x1f8] sm:$0xff]
        %v459 = vld [vmem:[%s315] sm:$0xff]
        %v460 = vld [vmem:[%s315 + $0x8] sm:$0xff]
        %v461 = vld [vmem:[%s315 + $0x10] sm:$0xff]
        %v462 = vld [vmem:[%s315 + $0x18] sm:$0xff]
        %v463 = vld [vmem:[%s315 + $0x20] sm:$0xff]
        %v464 = vld [vmem:[%s315 + $0x28] sm:$0xff]
        %v465 = vld [vmem:[%s315 + $0x30] sm:$0xff]
        %v466 = vld [vmem:[%s315 + $0x38] sm:$0xff]
        %v467 = vld [vmem:[%s315 + $0x40] sm:$0xff]
        %v468 = vld [vmem:[%s315 + $0x48] sm:$0xff]
        %v469 = vld [vmem:[%s315 + $0x50] sm:$0xff]
        %v470 = vld [vmem:[%s315 + $0x58] sm:$0xff]
        %v471 = vld [vmem:[%s315 + $0x60] sm:$0xff]
        %v472 = vld [vmem:[%s315 + $0x68] sm:$0xff]
        %v473 = vld [vmem:[%s315 + $0x70] sm:$0xff]
        %v474 = vld [vmem:[%s315 + $0x78] sm:$0xff]
        %v475 = vld [vmem:[%s315 + $0x80] sm:$0xff]
        %v476 = vld [vmem:[%s315 + $0x88] sm:$0xff]
        %v477 = vld [vmem:[%s315 + $0x90] sm:$0xff]
        %v478 = vld [vmem:[%s315 + $0x98] sm:$0xff]
        %v479 = vld [vmem:[%s315 + $0xa0] sm:$0xff]
        %v480 = vld [vmem:[%s315 + $0xa8] sm:$0xff]
        %v481 = vld [vmem:[%s315 + $0xb0] sm:$0xff]
        %v482 = vld [vmem:[%s315 + $0xb8] sm:$0xff]
        %v483 = vld [vmem:[%s315 + $0xc0] sm:$0xff]
        %v484 = vld [vmem:[%s315 + $0xc8] sm:$0xff]
        %v485 = vld [vmem:[%s315 + $0xd0] sm:$0xff]
        %v486 = vld [vmem:[%s315 + $0xd8] sm:$0xff]
        %v487 = vld [vmem:[%s315 + $0xe0] sm:$0xff]
        %v488 = vld [vmem:[%s315 + $0xe8] sm:$0xff]
        %v489 = vld [vmem:[%s315 + $0xf0] sm:$0xff]
        %v490 = vld [vmem:[%s315 + $0xf8] sm:$0xff]
        %v491 = vld [vmem:[%s315 + $0x100] sm:$0xff]
        %v492 = vld [vmem:[%s315 + $0x108] sm:$0xff]
        %v493 = vld [vmem:[%s315 + $0x110] sm:$0xff]
        %v494 = vld [vmem:[%s315 + $0x118] sm:$0xff]
        %v495 = vld [vmem:[%s315 + $0x120] sm:$0xff]
        %v496 = vld [vmem:[%s315 + $0x128] sm:$0xff]
        %v497 = vld [vmem:[%s315 + $0x130] sm:$0xff]
        %v498 = vld [vmem:[%s315 + $0x138] sm:$0xff]
        %v499 = vld [vmem:[%s315 + $0x140] sm:$0xff]
        %v500 = vld [vmem:[%s315 + $0x148] sm:$0xff]
        %v501 = vld [vmem:[%s315 + $0x150] sm:$0xff]
        %v502 = vld [vmem:[%s315 + $0x158] sm:$0xff]
        %v503 = vld [vmem:[%s315 + $0x160] sm:$0xff]
        %v504 = vld [vmem:[%s315 + $0x168] sm:$0xff]
        %v505 = vld [vmem:[%s315 + $0x170] sm:$0xff]
        %v506 = vld [vmem:[%s315 + $0x178] sm:$0xff]
        %v507 = vld [vmem:[%s315 + $0x180] sm:$0xff]
        %v508 = vld [vmem:[%s315 + $0x188] sm:$0xff]
        %v509 = vld [vmem:[%s315 + $0x190] sm:$0xff]
        %v510 = vld [vmem:[%s315 + $0x198] sm:$0xff]
        %v511 = vld [vmem:[%s315 + $0x1a0] sm:$0xff]
        %v512 = vld [vmem:[%s315 + $0x1a8] sm:$0xff]
        %v513 = vld [vmem:[%s315 + $0x1b0] sm:$0xff]
        %v514 = vld [vmem:[%s315 + $0x1b8] sm:$0xff]
        %v515 = vld [vmem:[%s315 + $0x1c0] sm:$0xff]
        %v516 = vld [vmem:[%s315 + $0x1c8] sm:$0xff]
        %v517 = vld [vmem:[%s315 + $0x1d0] sm:$0xff]
        %v518 = vld [vmem:[%s315 + $0x1d8] sm:$0xff]
        %v519 = vld [vmem:[%s315 + $0x1e0] sm:$0xff]
        %v520 = vld [vmem:[%s315 + $0x1e8] sm:$0xff]
        %v521 = vld [vmem:[%s315 + $0x1f0] sm:$0xff]
        %v522 = vld [vmem:[%s315 + $0x1f8] sm:$0xff]
        %523 = vmatprep.subr.mxu0 0.0
        %524 = vmatpush1.msra.mxu0 %v395
        %525 = vmatprep.subr.mxu0 0.0
        %526 = vmatpush1.msra.mxu0 %v396
        %527 = vmatprep.subr.mxu0 0.0
        %528 = vmatpush1.msra.mxu0 %v397
        %529 = vmatprep.subr.mxu0 0.0
        %530 = vmatpush1.msra.mxu0 %v398
        %531 = vmatprep.subr.mxu0 0.0
        %532 = vmatpush1.msra.mxu0 %v399
        %533 = vmatprep.subr.mxu0 0.0
        %534 = vmatpush1.msra.mxu0 %v400
        %535 = vmatprep.subr.mxu0 0.0
        %536 = vmatpush1.msra.mxu0 %v401
        %537 = vmatprep.subr.mxu0 0.0
        %538 = vmatpush1.msra.mxu0 %v402
        %539 = vmatprep.subr.mxu0 0.0
        %540 = vmatpush1.msra.mxu0 %v403
        %541 = vmatprep.subr.mxu0 0.0
        %542 = vmatpush1.msra.mxu0 %v404
        %543 = vmatprep.subr.mxu0 0.0
        %544 = vmatpush1.msra.mxu0 %v405
        %545 = vmatprep.subr.mxu0 0.0
        %546 = vmatpush1.msra.mxu0 %v406
        %547 = vmatprep.subr.mxu0 0.0
        %548 = vmatpush1.msra.mxu0 %v407
        %549 = vmatprep.subr.mxu0 0.0
        %550 = vmatpush1.msra.mxu0 %v408
        %551 = vmatprep.subr.mxu0 0.0
        %552 = vmatpush1.msra.mxu0 %v409
        %553 = vmatprep.subr.mxu0 0.0
        %554 = vmatpush1.msra.mxu0 %v410
        %555 = vmatprep.subr.mxu0 0.0
        %556 = vmatpush1.msra.mxu0 %v411
        %557 = vmatprep.subr.mxu0 0.0
        %558 = vmatpush1.msra.mxu0 %v412
        %559 = vmatprep.subr.mxu0 0.0
        %560 = vmatpush1.msra.mxu0 %v413
        %561 = vmatprep.subr.mxu0 0.0
        %562 = vmatpush1.msra.mxu0 %v414
        %563 = vmatprep.subr.mxu0 0.0
        %564 = vmatpush1.msra.mxu0 %v415
        %565 = vmatprep.subr.mxu0 0.0
        %566 = vmatpush1.msra.mxu0 %v416
        %567 = vmatprep.subr.mxu0 0.0
        %568 = vmatpush1.msra.mxu0 %v417
        %569 = vmatprep.subr.mxu0 0.0
        %570 = vmatpush1.msra.mxu0 %v418
        %571 = vmatprep.subr.mxu0 0.0
        %572 = vmatpush1.msra.mxu0 %v419
        %573 = vmatprep.subr.mxu0 0.0
        %574 = vmatpush1.msra.mxu0 %v420
        %575 = vmatprep.subr.mxu0 0.0
        %576 = vmatpush1.msra.mxu0 %v421
        %577 = vmatprep.subr.mxu0 0.0
        %578 = vmatpush1.msra.mxu0 %v422
        %579 = vmatprep.subr.mxu0 0.0
        %580 = vmatpush1.msra.mxu0 %v423
        %581 = vmatprep.subr.mxu0 0.0
        %582 = vmatpush1.msra.mxu0 %v424
        %583 = vmatprep.subr.mxu0 0.0
        %584 = vmatpush1.msra.mxu0 %v425
        %585 = vmatprep.subr.mxu0 0.0
        %586 = vmatpush1.msra.mxu0 %v426
        %587 = vmatprep.mubr.f32.mxu0 %v460
        %588 = vmatmul.mubr.f32.gmra.mrb[0].mxu0 %v459
        %v589 = vpop.f32.mrb[0].mxu0
        %v590 = vadd.f32 0.0, %v589
        %v591 = vpop.f32.mrb[0].mxu0
        %592 = vmatprep.mubr.f32.mxu0 %v464
        %593 = vmatmul.mubr.f32.gmra.mrb[0].mxu0 %v463
        %v594 = vpop.f32.mrb[0].mxu0
        %v595 = vadd.f32 0.0, %v594
        %v596 = vpop.f32.mrb[0].mxu0
        %597 = vmatprep.mubr.f32.mxu0 %v468
        %598 = vmatmul.mubr.f32.gmra.mrb[0].mxu0 %v467
        %v599 = vpop.f32.mrb[0].mxu0
        %v600 = vadd.f32 0.0, %v599
        %v601 = vpop.f32.mrb[0].mxu0
        %602 = vmatprep.mubr.f32.mxu0 %v472
        %603 = vmatmul.mubr.f32.gmra.mrb[0].mxu0 %v471
        %v604 = vpop.f32.mrb[0].mxu0
        %v605 = vadd.f32 0.0, %v604
        %v606 = vpop.f32.mrb[0].mxu0
        %607 = vmatprep.mubr.f32.mxu0 %v476
        %608 = vmatmul.mubr.f32.gmra.mrb[0].mxu0 %v475
        %v609 = vpop.f32.mrb[0].mxu0
        %v610 = vadd.f32 0.0, %v609
        %v611 = vpop.f32.mrb[0].mxu0
        %612 = vmatprep.mubr.f32.mxu0 %v480
        %613 = vmatmul.mubr.f32.gmra.mrb[0].mxu0 %v479
        %v614 = vpop.f32.mrb[0].mxu0
        %v615 = vadd.f32 0.0, %v614
        %v616 = vpop.f32.mrb[0].mxu0
        %617 = vmatprep.mubr.f32.mxu0 %v484
        %618 = vmatmul.mubr.f32.gmra.mrb[0].mxu0 %v483
        %v619 = vpop.f32.mrb[0].mxu0
        %v620 = vadd.f32 0.0, %v619
        %v621 = vpop.f32.mrb[0].mxu0
        %622 = vmatprep.mubr.f32.mxu0 %v488
        %623 = vmatmul.mubr.f32.gmra.mrb[0].mxu0 %v487
        %v624 = vpop.f32.mrb[0].mxu0
        %v625 = vadd.f32 0.0, %v624
        %v626 = vpop.f32.mrb[0].mxu0
        %627 = vmatprep.mubr.f32.mxu0 %v492
        %628 = vmatmul.mubr.f32.gmra.mrb[0].mxu0 %v491
        %v629 = vpop.f32.mrb[0].mxu0
        %v630 = vadd.f32 0.0, %v629
        %v631 = vpop.f32.mrb[0].mxu0
        %632 = vmatprep.mubr.f32.mxu0 %v496
        %633 = vmatmul.mubr.f32.gmra.mrb[0].mxu0 %v495
        %v634 = vpop.f32.mrb[0].mxu0
        %v635 = vadd.f32 0.0, %v634
        %v636 = vpop.f32.mrb[0].mxu0
        %637 = vmatprep.mubr.f32.mxu0 %v500
        %638 = vmatmul.mubr.f32.gmra.mrb[0].mxu0 %v499
        %v639 = vpop.f32.mrb[0].mxu0
        %v640 = vadd.f32 0.0, %v639
        %v641 = vpop.f32.mrb[0].mxu0
        %642 = vmatprep.mubr.f32.mxu0 %v504
        %643 = vmatmul.mubr.f32.gmra.mrb[0].mxu0 %v503
        %v644 = vpop.f32.mrb[0].mxu0
        %v645 = vadd.f32 0.0, %v644
        %v646 = vpop.f32.mrb[0].mxu0
        %647 = vmatprep.mubr.f32.mxu0 %v508
        %648 = vmatmul.mubr.f32.gmra.mrb[0].mxu0 %v507
        %v649 = vpop.f32.mrb[0].mxu0
        %v650 = vadd.f32 0.0, %v649
        %v651 = vpop.f32.mrb[0].mxu0
        %652 = vmatprep.mubr.f32.mxu0 %v512
        %653 = vmatmul.mubr.f32.gmra.mrb[0].mxu0 %v511
        %v654 = vpop.f32.mrb[0].mxu0
        %v655 = vadd.f32 0.0, %v654
        %v656 = vpop.f32.mrb[0].mxu0
        %657 = vmatprep.mubr.f32.mxu0 %v516
        %658 = vmatmul.mubr.f32.gmra.mrb[0].mxu0 %v515
        %v659 = vpop.f32.mrb[0].mxu0
        %v660 = vadd.f32 0.0, %v659
        %v661 = vpop.f32.mrb[0].mxu0
        %662 = vmatprep.mubr.f32.mxu0 %v520
        %663 = vmatmul.mubr.f32.gmra.mrb[0].mxu0 %v519
        %v664 = vpop.f32.mrb[0].mxu0
        %v665 = vadd.f32 0.0, %v664
        %v666 = vpop.f32.mrb[0].mxu0
        %667 = vdwg.mxu0
        %668 = vmatprep.subr.mxu0 0.0
        %669 = vmatpush1.msra.mxu0 %v427
        %670 = vmatprep.subr.mxu0 0.0
        %671 = vmatpush1.msra.mxu0 %v428
        %672 = vmatprep.subr.mxu0 0.0
        %673 = vmatpush1.msra.mxu0 %v429
        %674 = vmatprep.subr.mxu0 0.0
        %675 = vmatpush1.msra.mxu0 %v430
        %676 = vmatprep.subr.mxu0 0.0
        %677 = vmatpush1.msra.mxu0 %v431
        %678 = vmatprep.subr.mxu0 0.0
        %679 = vmatpush1.msra.mxu0 %v432
        %680 = vmatprep.subr.mxu0 0.0
        %681 = vmatpush1.msra.mxu0 %v433
        %682 = vmatprep.subr.mxu0 0.0
        %683 = vmatpush1.msra.mxu0 %v434
        %684 = vmatprep.subr.mxu0 0.0
        %685 = vmatpush1.msra.mxu0 %v435
        %686 = vmatprep.subr.mxu0 0.0
        %687 = vmatpush1.msra.mxu0 %v436
        %688 = vmatprep.subr.mxu0 0.0
        %689 = vmatpush1.msra.mxu0 %v437
        %690 = vmatprep.subr.mxu0 0.0
        %691 = vmatpush1.msra.mxu0 %v438
        %692 = vmatprep.subr.mxu0 0.0
        %693 = vmatpush1.msra.mxu0 %v439
        %694 = vmatprep.subr.mxu0 0.0
        %695 = vmatpush1.msra.mxu0 %v440
        %696 = vmatprep.subr.mxu0 0.0
        %697 = vmatpush1.msra.mxu0 %v441
        %698 = vmatprep.subr.mxu0 0.0
        %699 = vmatpush1.msra.mxu0 %v442
        %700 = vmatprep.subr.mxu0 0.0
        %701 = vmatpush1.msra.mxu0 %v443
        %702 = vmatprep.subr.mxu0 0.0
        %703 = vmatpush1.msra.mxu0 %v444
        %704 = vmatprep.subr.mxu0 0.0
        %705 = vmatpush1.msra.mxu0 %v445
        %706 = vmatprep.subr.mxu0 0.0
        %707 = vmatpush1.msra.mxu0 %v446
        %708 = vmatprep.subr.mxu0 0.0
        %709 = vmatpush1.msra.mxu0 %v447
        %710 = vmatprep.subr.mxu0 0.0
        %711 = vmatpush1.msra.mxu0 %v448
        %712 = vmatprep.subr.mxu0 0.0
        %713 = vmatpush1.msra.mxu0 %v449
        %714 = vmatprep.subr.mxu0 0.0
        %715 = vmatpush1.msra.mxu0 %v450
        %716 = vmatprep.subr.mxu0 0.0
        %717 = vmatpush1.msra.mxu0 %v451
        %718 = vmatprep.subr.mxu0 0.0
        %719 = vmatpush1.msra.mxu0 %v452
        %720 = vmatprep.subr.mxu0 0.0
        %721 = vmatpush1.msra.mxu0 %v453
        %722 = vmatprep.subr.mxu0 0.0
        %723 = vmatpush1.msra.mxu0 %v454
        %724 = vmatprep.subr.mxu0 0.0
        %725 = vmatpush1.msra.mxu0 %v455
        %726 = vmatprep.subr.mxu0 0.0
        %727 = vmatpush1.msra.mxu0 %v456
        %728 = vmatprep.subr.mxu0 0.0
        %729 = vmatpush1.msra.mxu0 %v457
        %730 = vmatprep.subr.mxu0 0.0
        %731 = vmatpush1.msra.mxu0 %v458
        %732 = vmatprep.mubr.f32.mxu0 %v462
        %733 = vmatmul.mubr.f32.gmra.mrb[0].mxu0 %v461
        %v734 = vpop.f32.mrb[0].mxu0
        %v735 = vadd.f32 %v590, %v734
        %v736 = vpop.f32.mrb[0].mxu0
        %737 = vmatprep.mubr.f32.mxu0 %v466
        %738 = vmatmul.mubr.f32.gmra.mrb[0].mxu0 %v465
        %v739 = vpop.f32.mrb[0].mxu0
        %v740 = vadd.f32 %v595, %v739
        %v741 = vpop.f32.mrb[0].mxu0
        %742 = vmatprep.mubr.f32.mxu0 %v470
        %743 = vmatmul.mubr.f32.gmra.mrb[0].mxu0 %v469
        %v744 = vpop.f32.mrb[0].mxu0
        %v745 = vadd.f32 %v600, %v744
        %v746 = vpop.f32.mrb[0].mxu0
        %747 = vmatprep.mubr.f32.mxu0 %v474
        %748 = vmatmul.mubr.f32.gmra.mrb[0].mxu0 %v473
        %v749 = vpop.f32.mrb[0].mxu0
        %v750 = vadd.f32 %v605, %v749
        %v751 = vpop.f32.mrb[0].mxu0
        %752 = vmatprep.mubr.f32.mxu0 %v478
        %753 = vmatmul.mubr.f32.gmra.mrb[0].mxu0 %v477
        %v754 = vpop.f32.mrb[0].mxu0
        %v755 = vadd.f32 %v610, %v754
        %v756 = vpop.f32.mrb[0].mxu0
        %757 = vmatprep.mubr.f32.mxu0 %v482
        %758 = vmatmul.mubr.f32.gmra.mrb[0].mxu0 %v481
        %v759 = vpop.f32.mrb[0].mxu0
        %v760 = vadd.f32 %v615, %v759
        %v761 = vpop.f32.mrb[0].mxu0
        %762 = vmatprep.mubr.f32.mxu0 %v486
        %763 = vmatmul.mubr.f32.gmra.mrb[0].mxu0 %v485
        %v764 = vpop.f32.mrb[0].mxu0
        %v765 = vadd.f32 %v620, %v764
        %v766 = vpop.f32.mrb[0].mxu0
        %767 = vmatprep.mubr.f32.mxu0 %v490
        %768 = vmatmul.mubr.f32.gmra.mrb[0].mxu0 %v489
        %v769 = vpop.f32.mrb[0].mxu0
        %v770 = vadd.f32 %v625, %v769
        %v771 = vpop.f32.mrb[0].mxu0
        %772 = vmatprep.mubr.f32.mxu0 %v494
        %773 = vmatmul.mubr.f32.gmra.mrb[0].mxu0 %v493
        %v774 = vpop.f32.mrb[0].mxu0
        %v775 = vadd.f32 %v630, %v774
        %v776 = vpop.f32.mrb[0].mxu0
        %777 = vmatprep.mubr.f32.mxu0 %v498
        %778 = vmatmul.mubr.f32.gmra.mrb[0].mxu0 %v497
        %v779 = vpop.f32.mrb[0].mxu0
        %v780 = vadd.f32 %v635, %v779
        %v781 = vpop.f32.mrb[0].mxu0
        %782 = vmatprep.mubr.f32.mxu0 %v502
        %783 = vmatmul.mubr.f32.gmra.mrb[0].mxu0 %v501
        %v784 = vpop.f32.mrb[0].mxu0
        %v785 = vadd.f32 %v640, %v784
        %v786 = vpop.f32.mrb[0].mxu0
        %787 = vmatprep.mubr.f32.mxu0 %v506
        %788 = vmatmul.mubr.f32.gmra.mrb[0].mxu0 %v505
        %v789 = vpop.f32.mrb[0].mxu0
        %v790 = vadd.f32 %v645, %v789
        %v791 = vpop.f32.mrb[0].mxu0
        %792 = vmatprep.mubr.f32.mxu0 %v510
        %793 = vmatmul.mubr.f32.gmra.mrb[0].mxu0 %v509
        %v794 = vpop.f32.mrb[0].mxu0
        %v795 = vadd.f32 %v650, %v794
        %v796 = vpop.f32.mrb[0].mxu0
        %797 = vmatprep.mubr.f32.mxu0 %v514
        %798 = vmatmul.mubr.f32.gmra.mrb[0].mxu0 %v513
        %v799 = vpop.f32.mrb[0].mxu0
        %v800 = vadd.f32 %v655, %v799
        %v801 = vpop.f32.mrb[0].mxu0
        %802 = vmatprep.mubr.f32.mxu0 %v518
        %803 = vmatmul.mubr.f32.gmra.mrb[0].mxu0 %v517
        %v804 = vpop.f32.mrb[0].mxu0
        %v805 = vadd.f32 %v660, %v804
        %v806 = vpop.f32.mrb[0].mxu0
        %807 = vmatprep.mubr.f32.mxu0 %v522
        %808 = vmatmul.mubr.f32.gmra.mrb[0].mxu0 %v521
        %v809 = vpop.f32.mrb[0].mxu0
        %v810 = vadd.f32 %v665, %v809
        %v811 = vpop.f32.mrb[0].mxu0
        %812 = vdwg.mxu0
        %v813 = vld [vmem:[%s324] sm:$0xff]
        %v814 = vld [vmem:[%s324 + $0x8] sm:$0xff]
        %v815 = vld [vmem:[%s324 + $0x10] sm:$0xff]
        %v816 = vld [vmem:[%s324 + $0x18] sm:$0xff]
        %v817 = vld [vmem:[%s324 + $0x20] sm:$0xff]
        %v818 = vld [vmem:[%s324 + $0x28] sm:$0xff]
        %v819 = vld [vmem:[%s324 + $0x30] sm:$0xff]
        %v820 = vld [vmem:[%s324 + $0x38] sm:$0xff]
        %821 = vmatprep.subr.mxu0 0.0
        %822 = vmatpush1.msra.mxu0 %v395
        %823 = vmatprep.subr.mxu0 0.0
        %824 = vmatpush1.msra.mxu0 %v396
        %825 = vmatprep.subr.mxu0 0.0
        %826 = vmatpush1.msra.mxu0 %v397
        %827 = vmatprep.subr.mxu0 0.0
        %828 = vmatpush1.msra.mxu0 %v398
        %829 = vmatprep.subr.mxu0 0.0
        %830 = vmatpush1.msra.mxu0 %v399
        %831 = vmatprep.subr.mxu0 0.0
        %832 = vmatpush1.msra.mxu0 %v400
        %833 = vmatprep.subr.mxu0 0.0
        %834 = vmatpush1.msra.mxu0 %v401
        %835 = vmatprep.subr.mxu0 0.0
        %836 = vmatpush1.msra.mxu0 %v402
        %837 = vmatprep.subr.mxu0 0.0
        %838 = vmatpush1.msra.mxu0 %v403
        %839 = vmatprep.subr.mxu0 0.0
        %840 = vmatpush1.msra.mxu0 %v404
        %841 = vmatprep.subr.mxu0 0.0
        %842 = vmatpush1.msra.mxu0 %v405
        %843 = vmatprep.subr.mxu0 0.0
        %844 = vmatpush1.msra.mxu0 %v406
        %845 = vmatprep.subr.mxu0 0.0
        %846 = vmatpush1.msra.mxu0 %v407
        %847 = vmatprep.subr.mxu0 0.0
        %848 = vmatpush1.msra.mxu0 %v408
        %849 = vmatprep.subr.mxu0 0.0
        %850 = vmatpush1.msra.mxu0 %v409
        %851 = vmatprep.subr.mxu0 0.0
        %852 = vmatpush1.msra.mxu0 %v410
        %853 = vmatprep.subr.mxu0 0.0
        %854 = vmatpush1.msra.mxu0 %v411
        %855 = vmatprep.subr.mxu0 0.0
        %856 = vmatpush1.msra.mxu0 %v412
        %857 = vmatprep.subr.mxu0 0.0
        %858 = vmatpush1.msra.mxu0 %v413
        %859 = vmatprep.subr.mxu0 0.0
        %860 = vmatpush1.msra.mxu0 %v414
        %861 = vmatprep.subr.mxu0 0.0
        %862 = vmatpush1.msra.mxu0 %v415
        %863 = vmatprep.subr.mxu0 0.0
        %864 = vmatpush1.msra.mxu0 %v416
        %865 = vmatprep.subr.mxu0 0.0
        %866 = vmatpush1.msra.mxu0 %v417
        %867 = vmatprep.subr.mxu0 0.0
        %868 = vmatpush1.msra.mxu0 %v418
        %869 = vmatprep.subr.mxu0 0.0
        %870 = vmatpush1.msra.mxu0 %v419
        %871 = vmatprep.subr.mxu0 0.0
        %872 = vmatpush1.msra.mxu0 %v420
        %873 = vmatprep.subr.mxu0 0.0
        %874 = vmatpush1.msra.mxu0 %v421
        %875 = vmatprep.subr.mxu0 0.0
        %876 = vmatpush1.msra.mxu0 %v422
        %877 = vmatprep.subr.mxu0 0.0
        %878 = vmatpush1.msra.mxu0 %v423
        %879 = vmatprep.subr.mxu0 0.0
        %880 = vmatpush1.msra.mxu0 %v424
        %881 = vmatprep.subr.mxu0 0.0
        %882 = vmatpush1.msra.mxu0 %v425
        %883 = vmatprep.subr.mxu0 0.0
        %884 = vmatpush1.msra.mxu0 %v426
        %885 = vmatprep.mubr.f32.mxu0 %v814
        %886 = vmatmul.mubr.f32.gmra.mrb[0].mxu0 %v813
        %v887 = vpop.f32.mrb[0].mxu0
        %v888 = vadd.f32 0.0, %v887
        %v889 = vpop.f32.mrb[0].mxu0
        %890 = vmatprep.mubr.f32.mxu0 %v818
        %891 = vmatmul.mubr.f32.gmra.mrb[0].mxu0 %v817
        %v892 = vpop.f32.mrb[0].mxu0
        %v893 = vadd.f32 0.0, %v892
        %v894 = vpop.f32.mrb[0].mxu0
        %895 = vdwg.mxu0
        %896 = vmatprep.subr.mxu0 0.0
        %897 = vmatpush1.msra.mxu0 %v427
        %898 = vmatprep.subr.mxu0 0.0
        %899 = vmatpush1.msra.mxu0 %v428
        %900 = vmatprep.subr.mxu0 0.0
        %901 = vmatpush1.msra.mxu0 %v429
        %902 = vmatprep.subr.mxu0 0.0
        %903 = vmatpush1.msra.mxu0 %v430
        %904 = vmatprep.subr.mxu0 0.0
        %905 = vmatpush1.msra.mxu0 %v431
        %906 = vmatprep.subr.mxu0 0.0
        %907 = vmatpush1.msra.mxu0 %v432
        %908 = vmatprep.subr.mxu0 0.0
        %909 = vmatpush1.msra.mxu0 %v433
        %910 = vmatprep.subr.mxu0 0.0
        %911 = vmatpush1.msra.mxu0 %v434
        %912 = vmatprep.subr.mxu0 0.0
        %913 = vmatpush1.msra.mxu0 %v435
        %914 = vmatprep.subr.mxu0 0.0
        %915 = vmatpush1.msra.mxu0 %v436
        %916 = vmatprep.subr.mxu0 0.0
        %917 = vmatpush1.msra.mxu0 %v437
        %918 = vmatprep.subr.mxu0 0.0
        %919 = vmatpush1.msra.mxu0 %v438
        %920 = vmatprep.subr.mxu0 0.0
        %921 = vmatpush1.msra.mxu0 %v439
        %922 = vmatprep.subr.mxu0 0.0
        %923 = vmatpush1.msra.mxu0 %v440
        %924 = vmatprep.subr.mxu0 0.0
        %925 = vmatpush1.msra.mxu0 %v441
        %926 = vmatprep.subr.mxu0 0.0
        %927 = vmatpush1.msra.mxu0 %v442
        %928 = vmatprep.subr.mxu0 0.0
        %929 = vmatpush1.msra.mxu0 %v443
        %930 = vmatprep.subr.mxu0 0.0
        %931 = vmatpush1.msra.mxu0 %v444
        %932 = vmatprep.subr.mxu0 0.0
        %933 = vmatpush1.msra.mxu0 %v445
        %934 = vmatprep.subr.mxu0 0.0
        %935 = vmatpush1.msra.mxu0 %v446
        %936 = vmatprep.subr.mxu0 0.0
        %937 = vmatpush1.msra.mxu0 %v447
        %938 = vmatprep.subr.mxu0 0.0
        %939 = vmatpush1.msra.mxu0 %v448
        %940 = vmatprep.subr.mxu0 0.0
        %941 = vmatpush1.msra.mxu0 %v449
        %942 = vmatprep.subr.mxu0 0.0
        %943 = vmatpush1.msra.mxu0 %v450
        %944 = vmatprep.subr.mxu0 0.0
        %945 = vmatpush1.msra.mxu0 %v451
        %946 = vmatprep.subr.mxu0 0.0
        %947 = vmatpush1.msra.mxu0 %v452
        %948 = vmatprep.subr.mxu0 0.0
        %949 = vmatpush1.msra.mxu0 %v453
        %950 = vmatprep.subr.mxu0 0.0
        %951 = vmatpush1.msra.mxu0 %v454
        %952 = vmatprep.subr.mxu0 0.0
        %953 = vmatpush1.msra.mxu0 %v455
        %954 = vmatprep.subr.mxu0 0.0
        %955 = vmatpush1.msra.mxu0 %v456
        %956 = vmatprep.subr.mxu0 0.0
        %957 = vmatpush1.msra.mxu0 %v457
        %958 = vmatprep.subr.mxu0 0.0
        %959 = vmatpush1.msra.mxu0 %v458
        %960 = vmatprep.mubr.f32.mxu0 %v816
        %961 = vmatmul.mubr.f32.gmra.mrb[0].mxu0 %v815
        %v962 = vpop.f32.mrb[0].mxu0
        %v963 = vadd.f32 %v888, %v962
        %v964 = vpop.f32.mrb[0].mxu0
        %965 = vmatprep.mubr.f32.mxu0 %v820
        %966 = vmatmul.mubr.f32.gmra.mrb[0].mxu0 %v819
        %v967 = vpop.f32.mrb[0].mxu0
        %v968 = vadd.f32 %v893, %v967
        %v969 = vpop.f32.mrb[0].mxu0
        %970 = vdwg.mxu0
        %v971 = vld [vmem:[%s333] sm:$0xff]
        %v972 = vld [vmem:[%s333 + $0x8] sm:$0xff]
        %v973 = vld [vmem:[%s333 + $0x10] sm:$0xff]
        %v974 = vld [vmem:[%s333 + $0x18] sm:$0xff]
        %v975 = vld [vmem:[%s333 + $0x20] sm:$0xff]
        %v976 = vld [vmem:[%s333 + $0x28] sm:$0xff]
        %v977 = vld [vmem:[%s333 + $0x30] sm:$0xff]
        %v978 = vld [vmem:[%s333 + $0x38] sm:$0xff]
        %979 = vmatprep.subr.mxu0 0.0
        %980 = vmatpush1.msra.mxu0 %v395
        %981 = vmatprep.subr.mxu0 0.0
        %982 = vmatpush1.msra.mxu0 %v396
        %983 = vmatprep.subr.mxu0 0.0
        %984 = vmatpush1.msra.mxu0 %v397
        %985 = vmatprep.subr.mxu0 0.0
        %986 = vmatpush1.msra.mxu0 %v398
        %987 = vmatprep.subr.mxu0 0.0
        %988 = vmatpush1.msra.mxu0 %v399
        %989 = vmatprep.subr.mxu0 0.0
        %990 = vmatpush1.msra.mxu0 %v400
        %991 = vmatprep.subr.mxu0 0.0
        %992 = vmatpush1.msra.mxu0 %v401
        %993 = vmatprep.subr.mxu0 0.0
        %994 = vmatpush1.msra.mxu0 %v402
        %995 = vmatprep.subr.mxu0 0.0
        %996 = vmatpush1.msra.mxu0 %v403
        %997 = vmatprep.subr.mxu0 0.0
        %998 = vmatpush1.msra.mxu0 %v404
        %999 = vmatprep.subr.mxu0 0.0
        %1000 = vmatpush1.msra.mxu0 %v405
        %1001 = vmatprep.subr.mxu0 0.0
        %1002 = vmatpush1.msra.mxu0 %v406
        %1003 = vmatprep.subr.mxu0 0.0
        %1004 = vmatpush1.msra.mxu0 %v407
        %1005 = vmatprep.subr.mxu0 0.0
        %1006 = vmatpush1.msra.mxu0 %v408
        %1007 = vmatprep.subr.mxu0 0.0
        %1008 = vmatpush1.msra.mxu0 %v409
        %1009 = vmatprep.subr.mxu0 0.0
        %1010 = vmatpush1.msra.mxu0 %v410
        %1011 = vmatprep.subr.mxu0 0.0
        %1012 = vmatpush1.msra.mxu0 %v411
        %1013 = vmatprep.subr.mxu0 0.0
        %1014 = vmatpush1.msra.mxu0 %v412
        %1015 = vmatprep.subr.mxu0 0.0
        %1016 = vmatpush1.msra.mxu0 %v413
        %1017 = vmatprep.subr.mxu0 0.0
        %1018 = vmatpush1.msra.mxu0 %v414
        %1019 = vmatprep.subr.mxu0 0.0
        %1020 = vmatpush1.msra.mxu0 %v415
        %1021 = vmatprep.subr.mxu0 0.0
        %1022 = vmatpush1.msra.mxu0 %v416
        %1023 = vmatprep.subr.mxu0 0.0
        %1024 = vmatpush1.msra.mxu0 %v417
        %1025 = vmatprep.subr.mxu0 0.0
        %1026 = vmatpush1.msra.mxu0 %v418
        %1027 = vmatprep.subr.mxu0 0.0
        %1028 = vmatpush1.msra.mxu0 %v419
        %1029 = vmatprep.subr.mxu0 0.0
        %1030 = vmatpush1.msra.mxu0 %v420
        %1031 = vmatprep.subr.mxu0 0.0
        %1032 = vmatpush1.msra.mxu0 %v421
        %1033 = vmatprep.subr.mxu0 0.0
        %1034 = vmatpush1.msra.mxu0 %v422
        %1035 = vmatprep.subr.mxu0 0.0
        %1036 = vmatpush1.msra.mxu0 %v423
        %1037 = vmatprep.subr.mxu0 0.0
        %1038 = vmatpush1.msra.mxu0 %v424
        %1039 = vmatprep.subr.mxu0 0.0
        %1040 = vmatpush1.msra.mxu0 %v425
        %1041 = vmatprep.subr.mxu0 0.0
        %1042 = vmatpush1.msra.mxu0 %v426
        %1043 = vmatprep.mubr.f32.mxu0 %v972
        %1044 = vmatmul.mubr.f32.gmra.mrb[0].mxu0 %v971
        %v1045 = vpop.f32.mrb[0].mxu0
        %v1046 = vadd.f32 0.0, %v1045
        %v1047 = vpop.f32.mrb[0].mxu0
        %1048 = vmatprep.mubr.f32.mxu0 %v976
        %1049 = vmatmul.mubr.f32.gmra.mrb[0].mxu0 %v975
        %v1050 = vpop.f32.mrb[0].mxu0
        %v1051 = vadd.f32 0.0, %v1050
        %v1052 = vpop.f32.mrb[0].mxu0
        %1053 = vdwg.mxu0
        %1054 = vmatprep.subr.mxu0 0.0
        %1055 = vmatpush1.msra.mxu0 %v427
        %1056 = vmatprep.subr.mxu0 0.0
        %1057 = vmatpush1.msra.mxu0 %v428
        %1058 = vmatprep.subr.mxu0 0.0
        %1059 = vmatpush1.msra.mxu0 %v429
        %1060 = vmatprep.subr.mxu0 0.0
        %1061 = vmatpush1.msra.mxu0 %v430
        %1062 = vmatprep.subr.mxu0 0.0
        %1063 = vmatpush1.msra.mxu0 %v431
        %1064 = vmatprep.subr.mxu0 0.0
        %1065 = vmatpush1.msra.mxu0 %v432
        %1066 = vmatprep.subr.mxu0 0.0
        %1067 = vmatpush1.msra.mxu0 %v433
        %1068 = vmatprep.subr.mxu0 0.0
        %1069 = vmatpush1.msra.mxu0 %v434
        %1070 = vmatprep.subr.mxu0 0.0
        %1071 = vmatpush1.msra.mxu0 %v435
        %1072 = vmatprep.subr.mxu0 0.0
        %1073 = vmatpush1.msra.mxu0 %v436
        %1074 = vmatprep.subr.mxu0 0.0
        %1075 = vmatpush1.msra.mxu0 %v437
        %1076 = vmatprep.subr.mxu0 0.0
        %1077 = vmatpush1.msra.mxu0 %v438
        %1078 = vmatprep.subr.mxu0 0.0
        %1079 = vmatpush1.msra.mxu0 %v439
        %1080 = vmatprep.subr.mxu0 0.0
        %1081 = vmatpush1.msra.mxu0 %v440
        %1082 = vmatprep.subr.mxu0 0.0
        %1083 = vmatpush1.msra.mxu0 %v441
        %1084 = vmatprep.subr.mxu0 0.0
        %1085 = vmatpush1.msra.mxu0 %v442
        %1086 = vmatprep.subr.mxu0 0.0
        %1087 = vmatpush1.msra.mxu0 %v443
        %1088 = vmatprep.subr.mxu0 0.0
        %1089 = vmatpush1.msra.mxu0 %v444
        %1090 = vmatprep.subr.mxu0 0.0
        %1091 = vmatpush1.msra.mxu0 %v445
        %1092 = vmatprep.subr.mxu0 0.0
        %1093 = vmatpush1.msra.mxu0 %v446
        %1094 = vmatprep.subr.mxu0 0.0
        %1095 = vmatpush1.msra.mxu0 %v447
        %1096 = vmatprep.subr.mxu0 0.0
        %1097 = vmatpush1.msra.mxu0 %v448
        %1098 = vmatprep.subr.mxu0 0.0
        %1099 = vmatpush1.msra.mxu0 %v449
        %1100 = vmatprep.subr.mxu0 0.0
        %1101 = vmatpush1.msra.mxu0 %v450
        %1102 = vmatprep.subr.mxu0 0.0
        %1103 = vmatpush1.msra.mxu0 %v451
        %1104 = vmatprep.subr.mxu0 0.0
        %1105 = vmatpush1.msra.mxu0 %v452
        %1106 = vmatprep.subr.mxu0 0.0
        %1107 = vmatpush1.msra.mxu0 %v453
        %1108 = vmatprep.subr.mxu0 0.0
        %1109 = vmatpush1.msra.mxu0 %v454
        %1110 = vmatprep.subr.mxu0 0.0
        %1111 = vmatpush1.msra.mxu0 %v455
        %1112 = vmatprep.subr.mxu0 0.0
        %1113 = vmatpush1.msra.mxu0 %v456
        %1114 = vmatprep.subr.mxu0 0.0
        %1115 = vmatpush1.msra.mxu0 %v457
        %1116 = vmatprep.subr.mxu0 0.0
        %1117 = vmatpush1.msra.mxu0 %v458
        %1118 = vmatprep.mubr.f32.mxu0 %v974
        %1119 = vmatmul.mubr.f32.gmra.mrb[0].mxu0 %v973
        %v1120 = vpop.f32.mrb[0].mxu0
        %v1121 = vadd.f32 %v1046, %v1120
        %v1122 = vpop.f32.mrb[0].mxu0
        %1123 = vmatprep.mubr.f32.mxu0 %v978
        %1124 = vmatmul.mubr.f32.gmra.mrb[0].mxu0 %v977
        %v1125 = vpop.f32.mrb[0].mxu0
        %v1126 = vadd.f32 %v1051, %v1125
        %v1127 = vpop.f32.mrb[0].mxu0
        %1128 = vdwg.mxu0
        %p1129 = scmp.eq.s32.totalorder %s29, 0
        %s1130 = scalar_select %p1129, 1, 0
        %v1131 = vstv %s1130
        %vm1132 = vcmp.eq.s32.totalorder %v1131, 1
        %v1133 = vsel %vm1132, 0.0, %v963
        %v1134 = vsel %vm1132, 0.0, %v968
        %p1135 = scmp.eq.s32.totalorder %s29, 1
        %s1136 = scalar_select %p1135, 1, 0
        %v1137 = vstv %s1136
        %vm1138 = vcmp.eq.s32.totalorder %v1137, 1
        %v1139 = vsel %vm1138, 0.0, %v1121
        %v1140 = vsel %vm1138, 0.0, %v1126
        %vm1161 = vcmask 1040384
        %v1162 = vrot.slane %v1133, 7
        %v1163 = vrot.slane %v1134, 7
        %v1164 = vsel %vm1161, %v1162, %v1163
        %v1165 = vrot.slane %v735, 7
        %v1166 = vrot.slane %v740, 7
        %v1167 = vsel %vm1161, %v1165, %v1166
        %v1168 = vrot.slane %v745, 7
        %v1169 = vrot.slane %v750, 7
        %v1170 = vsel %vm1161, %v1168, %v1169
        %v1171 = vrot.slane %v755, 7
        %v1172 = vrot.slane %v760, 7
        %v1173 = vsel %vm1161, %v1171, %v1172
        %v1174 = vrot.slane %v765, 7
        %v1175 = vrot.slane %v770, 7
        %v1176 = vsel %vm1161, %v1174, %v1175
        %v1177 = vrot.slane %v775, 7
        %v1178 = vrot.slane %v780, 7
        %v1179 = vsel %vm1161, %v1177, %v1178
        %v1180 = vrot.slane %v785, 7
        %v1181 = vrot.slane %v790, 7
        %v1182 = vsel %vm1161, %v1180, %v1181
        %v1183 = vrot.slane %v795, 7
        %v1184 = vrot.slane %v800, 7
        %v1185 = vsel %vm1161, %v1183, %v1184
        %v1186 = vrot.slane %v805, 7
        %v1187 = vrot.slane %v810, 7
        %v1188 = vsel %vm1161, %v1186, %v1187
        %v1189 = vrot.slane %v1139, 7
        %v1190 = vrot.slane %v1140, 7
        %v1191 = vsel %vm1161, %v1189, %v1190
        %v1212 = vsel %vm1161, 0.0, %v1162
        %v1213 = vsel %vm1161, 0.0, %v1165
        %v1214 = vsel %vm1161, 0.0, %v1168
        %v1215 = vsel %vm1161, 0.0, %v1171
        %v1216 = vsel %vm1161, 0.0, %v1174
        %v1217 = vsel %vm1161, 0.0, %v1177
        %v1218 = vsel %vm1161, 0.0, %v1180
        %v1219 = vsel %vm1161, 0.0, %v1183
        %v1220 = vsel %vm1161, 0.0, %v1186
        %v1221 = vsel %vm1161, 0.0, %v1189
        %vm1222 = vcmask 1046528
        %v1223 = vrot.slane %v1133, 1
        %v1224 = vrot.slane %v1134, 1
        %v1225 = vsel %vm1222, %v1223, %v1224
        %v1226 = vrot.slane %v735, 1
        %v1227 = vrot.slane %v740, 1
        %v1228 = vsel %vm1222, %v1226, %v1227
        %v1229 = vrot.slane %v745, 1
        %v1230 = vrot.slane %v750, 1
        %v1231 = vsel %vm1222, %v1229, %v1230
        %v1232 = vrot.slane %v755, 1
        %v1233 = vrot.slane %v760, 1
        %v1234 = vsel %vm1222, %v1232, %v1233
        %v1235 = vrot.slane %v765, 1
        %v1236 = vrot.slane %v770, 1
        %v1237 = vsel %vm1222, %v1235, %v1236
        %v1238 = vrot.slane %v775, 1
        %v1239 = vrot.slane %v780, 1
        %v1240 = vsel %vm1222, %v1238, %v1239
        %v1241 = vrot.slane %v785, 1
        %v1242 = vrot.slane %v790, 1
        %v1243 = vsel %vm1222, %v1241, %v1242
        %v1244 = vrot.slane %v795, 1
        %v1245 = vrot.slane %v800, 1
        %v1246 = vsel %vm1222, %v1244, %v1245
        %v1247 = vrot.slane %v805, 1
        %v1248 = vrot.slane %v810, 1
        %v1249 = vsel %vm1222, %v1247, %v1248
        %v1250 = vrot.slane %v1139, 1
        %v1251 = vrot.slane %v1140, 1
        %v1252 = vsel %vm1222, %v1250, %v1251
        %v1273 = vsel %vm1222, %v1224, 0.0
        %v1274 = vsel %vm1222, %v1227, 0.0
        %v1275 = vsel %vm1222, %v1230, 0.0
        %v1276 = vsel %vm1222, %v1233, 0.0
        %v1277 = vsel %vm1222, %v1236, 0.0
        %v1278 = vsel %vm1222, %v1239, 0.0
        %v1279 = vsel %vm1222, %v1242, 0.0
        %v1280 = vsel %vm1222, %v1245, 0.0
        %v1281 = vsel %vm1222, %v1248, 0.0
        %v1282 = vsel %vm1222, %v1251, 0.0
        %v1283 = vlaneseq
        %v1284 = vand.u32 %v1283, 127
        %vm1285 = vcmp.eq.s32.totalorder %v1284, 0
        %v1286 = vsel %vm1285, %v1212, 0.0
        %v1287 = vsel %vm1285, %v1164, 0.0
        %v1288 = vsel %vm1285, %v1213, 0.0
        %v1289 = vsel %vm1285, %v1167, 0.0
        %v1290 = vsel %vm1285, %v1214, 0.0
        %v1291 = vsel %vm1285, %v1170, 0.0
        %v1292 = vsel %vm1285, %v1215, 0.0
        %v1293 = vsel %vm1285, %v1173, 0.0
        %v1294 = vsel %vm1285, %v1216, 0.0
        %v1295 = vsel %vm1285, %v1176, 0.0
        %v1296 = vsel %vm1285, %v1217, 0.0
        %v1297 = vsel %vm1285, %v1179, 0.0
        %v1298 = vsel %vm1285, %v1218, 0.0
        %v1299 = vsel %vm1285, %v1182, 0.0
        %v1300 = vsel %vm1285, %v1219, 0.0
        %v1301 = vsel %vm1285, %v1185, 0.0
        %vm1302 = vcmp.eq.s32.totalorder %v1284, 1
        %v1303 = vsel %vm1302, %v1133, 0.0
        %v1304 = vsel %vm1302, %v1134, 0.0
        %v1305 = vsel %vm1302, %v735, 0.0
        %v1306 = vsel %vm1302, %v740, 0.0
        %v1307 = vsel %vm1302, %v745, 0.0
        %v1308 = vsel %vm1302, %v750, 0.0
        %v1309 = vsel %vm1302, %v755, 0.0
        %v1310 = vsel %vm1302, %v760, 0.0
        %v1311 = vsel %vm1302, %v765, 0.0
        %v1312 = vsel %vm1302, %v770, 0.0
        %v1313 = vsel %vm1302, %v775, 0.0
        %v1314 = vsel %vm1302, %v780, 0.0
        %v1315 = vsel %vm1302, %v785, 0.0
        %v1316 = vsel %vm1302, %v790, 0.0
        %v1317 = vsel %vm1302, %v795, 0.0
        %v1318 = vsel %vm1302, %v800, 0.0
        %v1319 = vadd.f32 %v1286, %v1303
        %v1320 = vadd.f32 %v1287, %v1304
        %v1321 = vadd.f32 %v1288, %v1305
        %v1322 = vadd.f32 %v1289, %v1306
        %v1323 = vadd.f32 %v1290, %v1307
        %v1324 = vadd.f32 %v1291, %v1308
        %v1325 = vadd.f32 %v1292, %v1309
        %v1326 = vadd.f32 %v1293, %v1310
        %v1327 = vadd.f32 %v1294, %v1311
        %v1328 = vadd.f32 %v1295, %v1312
        %v1329 = vadd.f32 %v1296, %v1313
        %v1330 = vadd.f32 %v1297, %v1314
        %v1331 = vadd.f32 %v1298, %v1315
        %v1332 = vadd.f32 %v1299, %v1316
        %v1333 = vadd.f32 %v1300, %v1317
        %v1334 = vadd.f32 %v1301, %v1318
        %vm1335 = vcmp.eq.s32.totalorder %v1284, 2
        %v1336 = vsel %vm1335, %v1225, 0.0
        %v1337 = vsel %vm1335, %v1273, 0.0
        %v1338 = vsel %vm1335, %v1228, 0.0
        %v1339 = vsel %vm1335, %v1274, 0.0
        %v1340 = vsel %vm1335, %v1231, 0.0
        %v1341 = vsel %vm1335, %v1275, 0.0
        %v1342 = vsel %vm1335, %v1234, 0.0
        %v1343 = vsel %vm1335, %v1276, 0.0
        %v1344 = vsel %vm1335, %v1237, 0.0
        %v1345 = vsel %vm1335, %v1277, 0.0
        %v1346 = vsel %vm1335, %v1240, 0.0
        %v1347 = vsel %vm1335, %v1278, 0.0
        %v1348 = vsel %vm1335, %v1243, 0.0
        %v1349 = vsel %vm1335, %v1279, 0.0
        %v1350 = vsel %vm1335, %v1246, 0.0
        %v1351 = vsel %vm1335, %v1280, 0.0
        %v1352 = vadd.f32 %v1319, %v1336
        %v1353 = vadd.f32 %v1320, %v1337
        %v1354 = vadd.f32 %v1321, %v1338
        %v1355 = vadd.f32 %v1322, %v1339
        %v1356 = vadd.f32 %v1323, %v1340
        %v1357 = vadd.f32 %v1324, %v1341
        %v1358 = vadd.f32 %v1325, %v1342
        %v1359 = vadd.f32 %v1326, %v1343
        %v1360 = vadd.f32 %v1327, %v1344
        %v1361 = vadd.f32 %v1328, %v1345
        %v1362 = vadd.f32 %v1329, %v1346
        %v1363 = vadd.f32 %v1330, %v1347
        %v1364 = vadd.f32 %v1331, %v1348
        %v1365 = vadd.f32 %v1332, %v1349
        %v1366 = vadd.f32 %v1333, %v1350
        %v1367 = vadd.f32 %v1334, %v1351
        %vm1368 = vcmp.eq.s32.totalorder %v1284, 3
        %v1369 = vsel %vm1368, %v1213, 0.0
        %v1370 = vsel %vm1368, %v1167, 0.0
        %v1371 = vsel %vm1368, %v1214, 0.0
        %v1372 = vsel %vm1368, %v1170, 0.0
        %v1373 = vsel %vm1368, %v1215, 0.0
        %v1374 = vsel %vm1368, %v1173, 0.0
        %v1375 = vsel %vm1368, %v1216, 0.0
        %v1376 = vsel %vm1368, %v1176, 0.0
        %v1377 = vsel %vm1368, %v1217, 0.0
        %v1378 = vsel %vm1368, %v1179, 0.0
        %v1379 = vsel %vm1368, %v1218, 0.0
        %v1380 = vsel %vm1368, %v1182, 0.0
        %v1381 = vsel %vm1368, %v1219, 0.0
        %v1382 = vsel %vm1368, %v1185, 0.0
        %v1383 = vsel %vm1368, %v1220, 0.0
        %v1384 = vsel %vm1368, %v1188, 0.0
        %v1385 = vadd.f32 %v1352, %v1369
        %v1386 = vadd.f32 %v1353, %v1370
        %v1387 = vadd.f32 %v1354, %v1371
        %v1388 = vadd.f32 %v1355, %v1372
        %v1389 = vadd.f32 %v1356, %v1373
        %v1390 = vadd.f32 %v1357, %v1374
        %v1391 = vadd.f32 %v1358, %v1375
        %v1392 = vadd.f32 %v1359, %v1376
        %v1393 = vadd.f32 %v1360, %v1377
        %v1394 = vadd.f32 %v1361, %v1378
        %v1395 = vadd.f32 %v1362, %v1379
        %v1396 = vadd.f32 %v1363, %v1380
        %v1397 = vadd.f32 %v1364, %v1381
        %v1398 = vadd.f32 %v1365, %v1382
        %v1399 = vadd.f32 %v1366, %v1383
        %v1400 = vadd.f32 %v1367, %v1384
        %vm1401 = vcmp.eq.s32.totalorder %v1284, 4
        %v1402 = vsel %vm1401, %v735, 0.0
        %v1403 = vsel %vm1401, %v740, 0.0
        %v1404 = vsel %vm1401, %v745, 0.0
        %v1405 = vsel %vm1401, %v750, 0.0
        %v1406 = vsel %vm1401, %v755, 0.0
        %v1407 = vsel %vm1401, %v760, 0.0
        %v1408 = vsel %vm1401, %v765, 0.0
        %v1409 = vsel %vm1401, %v770, 0.0
        %v1410 = vsel %vm1401, %v775, 0.0
        %v1411 = vsel %vm1401, %v780, 0.0
        %v1412 = vsel %vm1401, %v785, 0.0
        %v1413 = vsel %vm1401, %v790, 0.0
        %v1414 = vsel %vm1401, %v795, 0.0
        %v1415 = vsel %vm1401, %v800, 0.0
        %v1416 = vsel %vm1401, %v805, 0.0
        %v1417 = vsel %vm1401, %v810, 0.0
        %v1418 = vadd.f32 %v1385, %v1402
        %v1419 = vadd.f32 %v1386, %v1403
        %v1420 = vadd.f32 %v1387, %v1404
        %v1421 = vadd.f32 %v1388, %v1405
        %v1422 = vadd.f32 %v1389, %v1406
        %v1423 = vadd.f32 %v1390, %v1407
        %v1424 = vadd.f32 %v1391, %v1408
        %v1425 = vadd.f32 %v1392, %v1409
        %v1426 = vadd.f32 %v1393, %v1410
        %v1427 = vadd.f32 %v1394, %v1411
        %v1428 = vadd.f32 %v1395, %v1412
        %v1429 = vadd.f32 %v1396, %v1413
        %v1430 = vadd.f32 %v1397, %v1414
        %v1431 = vadd.f32 %v1398, %v1415
        %v1432 = vadd.f32 %v1399, %v1416
        %v1433 = vadd.f32 %v1400, %v1417
        %vm1434 = vcmp.eq.s32.totalorder %v1284, 5
        %v1435 = vsel %vm1434, %v1228, 0.0
        %v1436 = vsel %vm1434, %v1274, 0.0
        %v1437 = vsel %vm1434, %v1231, 0.0
        %v1438 = vsel %vm1434, %v1275, 0.0
        %v1439 = vsel %vm1434, %v1234, 0.0
        %v1440 = vsel %vm1434, %v1276, 0.0
        %v1441 = vsel %vm1434, %v1237, 0.0
        %v1442 = vsel %vm1434, %v1277, 0.0
        %v1443 = vsel %vm1434, %v1240, 0.0
        %v1444 = vsel %vm1434, %v1278, 0.0
        %v1445 = vsel %vm1434, %v1243, 0.0
        %v1446 = vsel %vm1434, %v1279, 0.0
        %v1447 = vsel %vm1434, %v1246, 0.0
        %v1448 = vsel %vm1434, %v1280, 0.0
        %v1449 = vsel %vm1434, %v1249, 0.0
        %v1450 = vsel %vm1434, %v1281, 0.0
        %v1451 = vadd.f32 %v1418, %v1435
        %v1452 = vadd.f32 %v1419, %v1436
        %v1453 = vadd.f32 %v1420, %v1437
        %v1454 = vadd.f32 %v1421, %v1438
        %v1455 = vadd.f32 %v1422, %v1439
        %v1456 = vadd.f32 %v1423, %v1440
        %v1457 = vadd.f32 %v1424, %v1441
        %v1458 = vadd.f32 %v1425, %v1442
        %v1459 = vadd.f32 %v1426, %v1443
        %v1460 = vadd.f32 %v1427, %v1444
        %v1461 = vadd.f32 %v1428, %v1445
        %v1462 = vadd.f32 %v1429, %v1446
        %v1463 = vadd.f32 %v1430, %v1447
        %v1464 = vadd.f32 %v1431, %v1448
        %v1465 = vadd.f32 %v1432, %v1449
        %v1466 = vadd.f32 %v1433, %v1450
        %vm1467 = vcmp.eq.s32.totalorder %v1284, 6
        %v1468 = vsel %vm1467, %v1214, 0.0
        %v1469 = vsel %vm1467, %v1170, 0.0
        %v1470 = vsel %vm1467, %v1215, 0.0
        %v1471 = vsel %vm1467, %v1173, 0.0
        %v1472 = vsel %vm1467, %v1216, 0.0
        %v1473 = vsel %vm1467, %v1176, 0.0
        %v1474 = vsel %vm1467, %v1217, 0.0
        %v1475 = vsel %vm1467, %v1179, 0.0
        %v1476 = vsel %vm1467, %v1218, 0.0
        %v1477 = vsel %vm1467, %v1182, 0.0
        %v1478 = vsel %vm1467, %v1219, 0.0
        %v1479 = vsel %vm1467, %v1185, 0.0
        %v1480 = vsel %vm1467, %v1220, 0.0
        %v1481 = vsel %vm1467, %v1188, 0.0
        %v1482 = vsel %vm1467, %v1221, 0.0
        %v1483 = vsel %vm1467, %v1191, 0.0
        %v1484 = vadd.f32 %v1451, %v1468
        %v1485 = vadd.f32 %v1452, %v1469
        %v1486 = vadd.f32 %v1453, %v1470
        %v1487 = vadd.f32 %v1454, %v1471
        %v1488 = vadd.f32 %v1455, %v1472
        %v1489 = vadd.f32 %v1456, %v1473
        %v1490 = vadd.f32 %v1457, %v1474
        %v1491 = vadd.f32 %v1458, %v1475
        %v1492 = vadd.f32 %v1459, %v1476
        %v1493 = vadd.f32 %v1460, %v1477
        %v1494 = vadd.f32 %v1461, %v1478
        %v1495 = vadd.f32 %v1462, %v1479
        %v1496 = vadd.f32 %v1463, %v1480
        %v1497 = vadd.f32 %v1464, %v1481
        %v1498 = vadd.f32 %v1465, %v1482
        %v1499 = vadd.f32 %v1466, %v1483
        %vm1500 = vcmp.eq.s32.totalorder %v1284, 7
        %v1501 = vsel %vm1500, %v745, 0.0
        %v1502 = vsel %vm1500, %v750, 0.0
        %v1503 = vsel %vm1500, %v755, 0.0
        %v1504 = vsel %vm1500, %v760, 0.0
        %v1505 = vsel %vm1500, %v765, 0.0
        %v1506 = vsel %vm1500, %v770, 0.0
        %v1507 = vsel %vm1500, %v775, 0.0
        %v1508 = vsel %vm1500, %v780, 0.0
        %v1509 = vsel %vm1500, %v785, 0.0
        %v1510 = vsel %vm1500, %v790, 0.0
        %v1511 = vsel %vm1500, %v795, 0.0
        %v1512 = vsel %vm1500, %v800, 0.0
        %v1513 = vsel %vm1500, %v805, 0.0
        %v1514 = vsel %vm1500, %v810, 0.0
        %v1515 = vsel %vm1500, %v1139, 0.0
        %v1516 = vsel %vm1500, %v1140, 0.0
        %v1517 = vadd.f32 %v1484, %v1501
        %v1518 = vadd.f32 %v1485, %v1502
        %v1519 = vadd.f32 %v1486, %v1503
        %v1520 = vadd.f32 %v1487, %v1504
        %v1521 = vadd.f32 %v1488, %v1505
        %v1522 = vadd.f32 %v1489, %v1506
        %v1523 = vadd.f32 %v1490, %v1507
        %v1524 = vadd.f32 %v1491, %v1508
        %v1525 = vadd.f32 %v1492, %v1509
        %v1526 = vadd.f32 %v1493, %v1510
        %v1527 = vadd.f32 %v1494, %v1511
        %v1528 = vadd.f32 %v1495, %v1512
        %v1529 = vadd.f32 %v1496, %v1513
        %v1530 = vadd.f32 %v1497, %v1514
        %v1531 = vadd.f32 %v1498, %v1515
        %v1532 = vadd.f32 %v1499, %v1516
        %vm1533 = vcmp.eq.s32.totalorder %v1284, 8
        %v1534 = vsel %vm1533, %v1231, 0.0
        %v1535 = vsel %vm1533, %v1275, 0.0
        %v1536 = vsel %vm1533, %v1234, 0.0
        %v1537 = vsel %vm1533, %v1276, 0.0
        %v1538 = vsel %vm1533, %v1237, 0.0
        %v1539 = vsel %vm1533, %v1277, 0.0
        %v1540 = vsel %vm1533, %v1240, 0.0
        %v1541 = vsel %vm1533, %v1278, 0.0
        %v1542 = vsel %vm1533, %v1243, 0.0
        %v1543 = vsel %vm1533, %v1279, 0.0
        %v1544 = vsel %vm1533, %v1246, 0.0
        %v1545 = vsel %vm1533, %v1280, 0.0
        %v1546 = vsel %vm1533, %v1249, 0.0
        %v1547 = vsel %vm1533, %v1281, 0.0
        %v1548 = vsel %vm1533, %v1252, 0.0
        %v1549 = vsel %vm1533, %v1282, 0.0
        %v1550 = vadd.f32 %v1517, %v1534
        %v1551 = vadd.f32 %v1518, %v1535
        %v1552 = vadd.f32 %v1519, %v1536
        %v1553 = vadd.f32 %v1520, %v1537
        %v1554 = vadd.f32 %v1521, %v1538
        %v1555 = vadd.f32 %v1522, %v1539
        %v1556 = vadd.f32 %v1523, %v1540
        %v1557 = vadd.f32 %v1524, %v1541
        %v1558 = vadd.f32 %v1525, %v1542
        %v1559 = vadd.f32 %v1526, %v1543
        %v1560 = vadd.f32 %v1527, %v1544
        %v1561 = vadd.f32 %v1528, %v1545
        %v1562 = vadd.f32 %v1529, %v1546
        %v1563 = vadd.f32 %v1530, %v1547
        %v1564 = vadd.f32 %v1531, %v1548
        %v1565 = vadd.f32 %v1532, %v1549
        %vm1566 = vcmask 72704
        %v1567 = vsel %vm1566, %v1550, 0.0
        %1568 = vadd.xlane.f32.xlu0 %v1567
        %v1569 = vpop.xlane.xlu0 %1568
        %v1570 = vsel %vm1566, %v1551, 0.0
        %1571 = vadd.xlane.f32.xlu0 %v1570
        %v1572 = vpop.xlane.xlu0 %1571
        %v1573 = vsel %vm1566, %v1552, 0.0
        %1574 = vadd.xlane.f32.xlu0 %v1573
        %v1575 = vpop.xlane.xlu0 %1574
        %v1576 = vsel %vm1566, %v1553, 0.0
        %1577 = vadd.xlane.f32.xlu0 %v1576
        %v1578 = vpop.xlane.xlu0 %1577
        %v1579 = vsel %vm1566, %v1554, 0.0
        %1580 = vadd.xlane.f32.xlu0 %v1579
        %v1581 = vpop.xlane.xlu0 %1580
        %v1582 = vsel %vm1566, %v1555, 0.0
        %1583 = vadd.xlane.f32.xlu0 %v1582
        %v1584 = vpop.xlane.xlu0 %1583
        %v1585 = vsel %vm1566, %v1556, 0.0
        %1586 = vadd.xlane.f32.xlu0 %v1585
        %v1587 = vpop.xlane.xlu0 %1586
        %v1588 = vsel %vm1566, %v1557, 0.0
        %1589 = vadd.xlane.f32.xlu0 %v1588
        %v1590 = vpop.xlane.xlu0 %1589
        %v1591 = vsel %vm1566, %v1558, 0.0
        %1592 = vadd.xlane.f32.xlu0 %v1591
        %v1593 = vpop.xlane.xlu0 %1592
        %v1594 = vsel %vm1566, %v1559, 0.0
        %1595 = vadd.xlane.f32.xlu0 %v1594
        %v1596 = vpop.xlane.xlu0 %1595
        %v1597 = vsel %vm1566, %v1560, 0.0
        %1598 = vadd.xlane.f32.xlu0 %v1597
        %v1599 = vpop.xlane.xlu0 %1598
        %v1600 = vsel %vm1566, %v1561, 0.0
        %1601 = vadd.xlane.f32.xlu0 %v1600
        %v1602 = vpop.xlane.xlu0 %1601
        %v1603 = vsel %vm1566, %v1562, 0.0
        %1604 = vadd.xlane.f32.xlu0 %v1603
        %v1605 = vpop.xlane.xlu0 %1604
        %v1606 = vsel %vm1566, %v1563, 0.0
        %1607 = vadd.xlane.f32.xlu0 %v1606
        %v1608 = vpop.xlane.xlu0 %1607
        %v1609 = vsel %vm1566, %v1564, 0.0
        %1610 = vadd.xlane.f32.xlu0 %v1609
        %v1611 = vpop.xlane.xlu0 %1610
        %v1612 = vsel %vm1566, %v1565, 0.0
        %1613 = vadd.xlane.f32.xlu0 %v1612
        %v1614 = vpop.xlane.xlu0 %1613
        %v1615 = vld [vmem:[#allocation2] sm:$0x1]
        %v1617 = vlaneseq
        %v1618 = vshrl.u32 %v1617, 7
        %v1619 = vsub.s32 0, %v1618
        %v1620 = vrot.slane %v1615, %v1619
        %v1622 = vadd.f32 %v1569, %v1620
        %v1623 = vadd.f32 %v1572, %v1620
        %v1624 = vadd.f32 %v1575, %v1620
        %v1625 = vadd.f32 %v1578, %v1620
        %v1626 = vadd.f32 %v1581, %v1620
        %v1627 = vadd.f32 %v1584, %v1620
        %v1628 = vadd.f32 %v1587, %v1620
        %v1629 = vadd.f32 %v1590, %v1620
        %v1630 = vadd.f32 %v1593, %v1620
        %v1631 = vadd.f32 %v1596, %v1620
        %v1632 = vadd.f32 %v1599, %v1620
        %v1633 = vadd.f32 %v1602, %v1620
        %v1634 = vadd.f32 %v1605, %v1620
        %v1635 = vadd.f32 %v1608, %v1620
        %v1636 = vadd.f32 %v1611, %v1620
        %v1637 = vadd.f32 %v1614, %v1620
        %vm1638 = vcmask 7168
        %1639 = vst.msk [vmem:[%s393] sm:$0xff] %vm1638, %v1622
        %1640 = vst.msk [vmem:[%s393 + $0x8] sm:$0xff] %vm1638, %v1623
        %1641 = vst.msk [vmem:[%s393 + $0x10] sm:$0xff] %vm1638, %v1624
        %1642 = vst.msk [vmem:[%s393 + $0x18] sm:$0xff] %vm1638, %v1625
        %1643 = vst.msk [vmem:[%s393 + $0x20] sm:$0xff] %vm1638, %v1626
        %1644 = vst.msk [vmem:[%s393 + $0x28] sm:$0xff] %vm1638, %v1627
        %1645 = vst.msk [vmem:[%s393 + $0x30] sm:$0xff] %vm1638, %v1628
        %1646 = vst.msk [vmem:[%s393 + $0x38] sm:$0xff] %vm1638, %v1629
        %1647 = vst.msk [vmem:[%s393 + $0x40] sm:$0xff] %vm1638, %v1630
        %1648 = vst.msk [vmem:[%s393 + $0x48] sm:$0xff] %vm1638, %v1631
        %1649 = vst.msk [vmem:[%s393 + $0x50] sm:$0xff] %vm1638, %v1632
        %1650 = vst.msk [vmem:[%s393 + $0x58] sm:$0xff] %vm1638, %v1633
        %1651 = vst.msk [vmem:[%s393 + $0x60] sm:$0xff] %vm1638, %v1634
        %1652 = vst.msk [vmem:[%s393 + $0x68] sm:$0xff] %vm1638, %v1635
        %1653 = vst.msk [vmem:[%s393 + $0x70] sm:$0xff] %vm1638, %v1636
        %1654 = vst.msk [vmem:[%s393 + $0x78] sm:$0xff] %vm1638, %v1637
        %s1655 = smul.u32 8, %s29
        %p1656 = scmp.lt.s32.totalorder %s28, 1
        %s1657 = scalar_select %p1656, %s28, 1
        %p1658 = scmp.lt.s32.totalorder %s1655, 15
        %s1659 = scalar_select %p1658, %s1655, 15
        %s1660 = smul.addr %s1659, 2
        %s1661 = smul.addr %s1657, 32
        %s1662 = sadd.s32 %s1660, %s1661
        %s1663 = smul.addr %s1662, 8
        %s1664 = scalar_lea.vmem %s5, %s1663
        // Predicated region
        $region53: #{tpu_custom_call.1} parent=39 // pred_check
          %p1665 = pneg %p198
        $region54: #{tpu_custom_call.1} parent=39 // pred_check_branch
          %1667 = sbr.rel (%p1665) target = $region56
        $region55: #{tpu_custom_call.1} parent=39 // pred_region
          %s1668 = smul.u32 8, %s29
        $region56: #{tpu_custom_call.1} parent=39 // pred_fallthru
          _
      $region40: #{tpu_custom_call.1} parent=5 // pred_fallthru
        _
      %p1669 = scmp.le.s32.totalorder 2, %s19
      // Predicated region
      $region57: #{tpu_custom_call.1} parent=5 // pred_check
        %p1670 = pneg %p1669
      $region58: #{tpu_custom_call.1} parent=5 // pred_check_branch
        %1672 = sbr.rel (%p1670) target = $region60
      $region59: #{tpu_custom_call.1} parent=5 // pred_region
        %s1673 = ssub.s32 %s19, 2
        // Predicated region
        $region61: #{tpu_custom_call.1} parent=59 // pred_check
          %p1674 = pneg %p204
        $region62: #{tpu_custom_call.1} parent=59 // pred_check_branch
          %1676 = sbr.rel (%p1674) target = $region64
        $region63: #{tpu_custom_call.1} parent=59 // pred_region
          %s1677 = smul.u32 8, %s31
          %p1678 = scmp.lt.s32.totalorder %s30, 1
          %s1679 = scalar_select %p1678, %s30, 1
          %p1680 = scmp.lt.s32.totalorder %s1677, 15
          %s1681 = scalar_select %p1680, %s1677, 15
          %s1682 = smul.addr %s1681, 2
          %s1683 = smul.addr %s1679, 32
          %s1684 = sadd.s32 %s1682, %s1683
          %s1685 = smul.addr %s1684, 8
          %s1686 = scalar_lea.vmem %s5, %s1685
        $region64: #{tpu_custom_call.1} parent=59 // pred_fallthru
          _
      $region60: #{tpu_custom_call.1} parent=5 // pred_fallthru
        _
    $region6: #{tpu_custom_call.1} parent=1 // loop_footer
      %s23 = sadd.s32 1, %s19
    $region7: #{tpu_custom_call.1} parent=1 // loop_footer_branch
      %18 = sbr.rel target = $region3
    $region8: #{tpu_custom_call.1} parent=1 // loop_exit
      _
    %1687 = vsyncpa [#allocation4], 1
    %s1688 = scalar_lea.sflag [#allocation4], 1
    %1689 = vsyncpa %s1688, 1
    %1690 = vsyncpa [#allocation6], 1
    %s1691 = scalar_lea.sflag [#allocation6], 1
    %1692 = vsyncpa %s1691, 1

</llo_original>
